<compile_context>
chip_gen: v6e
topology: v6e:2x2x1
jax: 0.10.0
libtpu: 0.0.40
codegen_flags: <defaults>
</compile_context>

<pallas_src>
import functools

import jax
import jax.numpy as jnp
from jax.experimental import pallas as pl
from jax.experimental.pallas import tpu as pltpu


def _round_up(x, m):
    return ((x + m - 1) // m) * m


# ---------------------------------------------------------------------------
# Pallas kernel: tiled bf16 GEMM (f32 accumulate) + folded-BN shift + SiLU
# ---------------------------------------------------------------------------
def _conv_bn_silu_kernel(a_ref, w_ref, shift_ref, o_ref, acc_ref):
    # a_ref:     (tm, tk)  bf16 im2col tile
    # w_ref:     (tk, tn)  bf16 conv weights with BN scale pre-folded
    # shift_ref: (1,  tn)  f32  beta - running_mean * scale
    # o_ref:     (tm, tn)  output tile
    # acc_ref:   (tm, tn)  f32 accumulator scratch (resident across the K axis)
    kk = pl.program_id(2)

    @pl.when(kk == 0)
    def _():
        acc_ref[...] = jnp.zeros_like(acc_ref)

    acc_ref[...] += jnp.dot(a_ref[...], w_ref[...],
                            preferred_element_type=jnp.float32)

    @pl.when(kk == pl.num_programs(2) - 1)
    def _():
        y = acc_ref[...] + shift_ref[...]                      # folded BatchNorm2d
        # SiLU: y * sigmoid(y); sigmoid(y) = 0.5*(tanh(0.5*y)+1) -> single EUP op,
        # no exp(-y) overflow for very negative y.
        o_ref[...] = (y * (0.5 * (jnp.tanh(0.5 * y) + 1.0))).astype(o_ref.dtype)


def _fused_gemm_bn_silu(a, w, shift, *, out_dtype, tm, tn, tk, vmem_limit_bytes):
    Mp, Kp = a.shape
    _, C2p = w.shape
    grid = (Mp // tm, C2p // tn, Kp // tk)

    flops = 2 * Mp * Kp * C2p
    bytes_accessed = (a.size * a.dtype.itemsize + w.size * w.dtype.itemsize +
                      shift.size * 4 + Mp * C2p * jnp.dtype(out_dtype).itemsize)

    return pl.pallas_call(
        _conv_bn_silu_kernel,
        out_shape=jax.ShapeDtypeStruct((Mp, C2p), out_dtype),
        grid_spec=pltpu.PrefetchScalarGridSpec(
            num_scalar_prefetch=0,
            grid=grid,
            in_specs=[
                pl.BlockSpec((tm, tk), lambda i, j, kk: (i, kk)),
                pl.BlockSpec((tk, tn), lambda i, j, kk: (kk, j)),
                pl.BlockSpec((1, tn), lambda i, j, kk: (0, j)),
            ],
            out_specs=pl.BlockSpec((tm, tn), lambda i, j, kk: (i, j)),
            scratch_shapes=[pltpu.VMEM((tm, tn), jnp.float32)],
        ),
        compiler_params=pltpu.CompilerParams(
            dimension_semantics=("parallel", "parallel", "arbitrary"),
            vmem_limit_bytes=vmem_limit_bytes,
        ),
        cost_estimate=pl.CostEstimate(
            flops=flops,
            transcendentals=Mp * C2p,        # one tanh per output element
            bytes_accessed=bytes_accessed),
    )(a, w, shift)


# ---------------------------------------------------------------------------
# Tile selection (generation-aware heuristics from the perf review)
# ---------------------------------------------------------------------------
def _select_tiles(M, K, C2, out_itemsize):
    # C2 axis: pad to a multiple of 256 (v6e/v7x MXU is 256 wide); never tn=128.
    C2p = _round_up(C2, 256)
    tn = 512 if C2p % 512 == 0 else 256

    # K axis: prefer 256 alignment unless the extra zero-padding is large.
    Kp128 = _round_up(K, 128)
    Kp256 = _round_up(K, 256)
    Kp = Kp256 if (Kp256 - K) <= 0.25 * Kp256 else Kp128
    tk = next(t for t in (512, 256, 128) if Kp % t == 0)

    # M axis: big tiles for arithmetic intensity, but cap padding waste at ~15%.
    tm = 256
    for cand in (2048, 1024, 512, 256):
        mp_cand = _round_up(M, cand)
        if (mp_cand - M) <= 0.15 * mp_cand or cand == 256:
            tm = cand
            break
    Mp = _round_up(M, tm)

    def vmem_bytes(tm_, tn_, tk_):
        a = 2 * tm_ * tk_ * 2           # bf16 A tile, double buffered
        w = 2 * tk_ * tn_ * 2           # bf16 W tile, double buffered
        sh = 2 * tn_ * 4                # shift row
        out = 2 * tm_ * tn_ * out_itemsize
        acc = tm_ * tn_ * 4             # f32 accumulator scratch
        return a + w + sh + out + acc

    BUDGET = 36 * 1024 * 1024           # safe on v7x (64 MiB/TC) with headroom
    while vmem_bytes(tm, tn, tk) > BUDGET and tk > 128:
        tk //= 2
    while vmem_bytes(tm, tn, tk) > BUDGET and tm > 256:
        tm //= 2
        Mp = _round_up(M, tm)
    while vmem_bytes(tm, tn, tk) > BUDGET and tn > 256:
        tn //= 2

    # Small-problem fallback: keep >= 2 parallel (i, j) blocks so a dual-TC
    # chip (v7x) does not idle one TensorCore; shrink tm, never tn.
    while (Mp // tm) * (C2p // tn) < 2 and tm > 256:
        tm //= 2
        Mp = _round_up(M, tm)

    req = vmem_bytes(tm, tn, tk)
    vmem_limit = int(max(32 * 1024 * 1024, min(48 * 1024 * 1024, req * 3 // 2)))
    return Mp, Kp, C2p, tm, tn, tk, vmem_limit


# ---------------------------------------------------------------------------
# Glue: autopad, im2col, parameter folding, padding to tile multiples
# ---------------------------------------------------------------------------
def autopad(k, p=None, d=1):
    if d > 1:
        k = d * (k - 1) + 1 if isinstance(k, int) else [d * (x - 1) + 1 for x in k]
    if p is None:
        p = k // 2 if isinstance(k, int) else [x // 2 for x in k]
    return p


@functools.partial(jax.jit, static_argnames=("k", "s", "p"))
def conv_forward(x_nchw, weight, gamma, beta, running_mean, running_var,
                 *, k, s, p, eps=1e-5):
    """Forward pass of fdfat Conv: SiLU(BN(Conv2d(x))), x in NCHW."""
    N, C1, H, W = x_nchw.shape
    C2 = weight.shape[0]
    H_out = (H + 2 * p - k) // s + 1
    W_out = (W + 2 * p - k) // s + 1
    M = N * H_out * W_out
    K = k * k * C1
    out_dtype = x_nchw.dtype

    # --- NHWC + bf16 + im2col (bf16 halves the HBM traffic of the patch matrix)
    x = jnp.transpose(x_nchw, (0, 2, 3, 1)).astype(jnp.bfloat16)
    if k == 1 and p == 0:
        a = x[:, ::s, ::s, :].reshape(M, C1)       # 1x1 conv: no im2col needed
    else:
        x = jnp.pad(x, ((0, 0), (p, p), (p, p), (0, 0)))
        patches = []
        for kh in range(k):
            for kw in range(k):
                patches.append(x[:, kh:kh + H_out * s:s, kw:kw + W_out * s:s, :])
        a = jnp.concatenate(patches, axis=-1).reshape(M, K)

    # --- fold BatchNorm2d (inference) into weights / shift -------------------
    scale = gamma / jnp.sqrt(running_var + eps)                  # (C2,)
    shift = beta - running_mean * scale                          # (C2,)
    # PyTorch conv weight (C2, C1, kh, kw) -> (kh, kw, C1, C2) -> (K, C2)
    w_mat = jnp.transpose(weight, (2, 3, 1, 0)).reshape(K, C2)
    w_mat = (w_mat * scale[None, :]).astype(jnp.bfloat16)        # scale folded in

    # --- tile selection + padding to lane-dense, MXU-friendly sizes ----------
    out_itemsize = jnp.dtype(out_dtype).itemsize
    Mp, Kp, C2p, tm, tn, tk, vmem_limit = _select_tiles(M, K, C2, out_itemsize)

    a = jnp.pad(a, ((0, Mp - M), (0, Kp - K)))
    w_mat = jnp.pad(w_mat, ((0, Kp - K), (0, C2p - C2)))
    shift = jnp.pad(shift.astype(jnp.float32), (0, C2p - C2)).reshape(1, C2p)

    out = _fused_gemm_bn_silu(a, w_mat, shift, out_dtype=out_dtype,
                              tm=tm, tn=tn, tk=tk,
                              vmem_limit_bytes=vmem_limit)

    # (Mp, C2p) -> slice valid region -> NHWC -> NCHW
    out = out[:M, :C2].reshape(N, H_out, W_out, C2)
    return jnp.transpose(out, (0, 3, 1, 2))


# ---------------------------------------------------------------------------
# Reference (pure JAX, f32) for sanity check
# ---------------------------------------------------------------------------
def conv_forward_ref(x_nchw, weight, gamma, beta, running_mean, running_var,
                     *, k, s, p, eps=1e-5):
    y = jax.lax.conv_general_dilated(
        x_nchw, weight, window_strides=(s, s),
        padding=((p, p), (p, p)),
        dimension_numbers=("NCHW", "OIHW", "NCHW"))
    scale = (gamma / jnp.sqrt(running_var + eps))[None, :, None, None]
    shift = (beta - running_mean * gamma / jnp.sqrt(running_var + eps))[None, :, None, None]
    y = y * scale + shift
    return y * jax.nn.sigmoid(y)


if __name__ == "__main__":
    key = jax.random.PRNGKey(0)
    kx, kw = jax.random.split(key)

    # Conv(c1=4, c2=8, k=3, s=1) -> autopad p=1
    N, C1, H, W = 2, 4, 16, 16
    C2, K, S = 8, 3, 1
    P = autopad(K, None, 1)

    x = jax.random.normal(kx, (N, C1, H, W), dtype=jnp.float32)
    weight = jax.random.normal(kw, (C2, C1, K, K), dtype=jnp.float32) * 0.1

    # Deterministic BatchNorm parameters (inference mode)
    gamma = jnp.linspace(0.5, 1.5, C2, dtype=jnp.float32)
    beta = jnp.linspace(-0.2, 0.2, C2, dtype=jnp.float32)
    running_mean = jnp.linspace(-0.1, 0.1, C2, dtype=jnp.float32)
    running_var = jnp.linspace(0.5, 2.0, C2, dtype=jnp.float32)

    out = conv_forward(x, weight, gamma, beta, running_mean, running_var,
                       k=K, s=S, p=P)
    out = jax.block_until_ready(out)

    ref = conv_forward_ref(x, weight, gamma, beta, running_mean, running_var,
                           k=K, s=S, p=P)
    assert out.shape == (N, C2, H, W), out.shape
    # bf16 GEMM inputs -> relaxed tolerance vs f32 reference.
    assert jnp.allclose(out, ref, atol=5e-2, rtol=5e-2), "mismatch vs reference"

    print("KERNEL_OK")
</pallas_src>

<mosaic_0001>
module attributes {stable_mosaic.version = 11 : i64} {
  func.func @_conv_bn_silu_kernel(%arg0: i32, %arg1: i32, %arg2: i32, %arg3: memref<256x128xbf16, #tpu.memory_space<vmem>>, %arg4: memref<128x256xbf16, #tpu.memory_space<vmem>>, %arg5: memref<1x256xf32, #tpu.memory_space<vmem>>, %arg6: memref<256x256xf32, #tpu.memory_space<vmem>>, %arg7: memref<256x256xf32, #tpu.memory_space<vmem>>) attributes {dimension_semantics = [#tpu.dimension_semantics<parallel>, #tpu.dimension_semantics<parallel>, #tpu.dimension_semantics<arbitrary>], iteration_bounds = array<i64: 2, 1, 1>, scalar_prefetch = 0 : i64, scratch_operands = 1 : i64, tpu.core_type = #tpu.core_type<tc>, window_params = [{transform_indices = @transform_0, window_bounds = array<i64: 256, 128>}, {transform_indices = @transform_1, window_bounds = array<i64: 128, 256>}, {transform_indices = @transform_2, window_bounds = array<i64: 1, 256>}, {transform_indices = @transform_3, window_bounds = array<i64: 256, 256>}]} {
    %c0_i32 = arith.constant 0 : i32
    %0 = arith.cmpi eq, %arg2, %c0_i32 : i32
    %1 = arith.extui %0 : i1 to i32
    %c0_i32_0 = arith.constant 0 : i32
    %2 = arith.cmpi ne, %1, %c0_i32_0 : i32
    scf.if %2 {
      %cst_10 = arith.constant 0.000000e+00 : f32
      %12 = vector.broadcast %cst_10 : f32 to vector<256x256xf32>
      %c0_11 = arith.constant 0 : index
      %c0_12 = arith.constant 0 : index
      %13 = vector.load %arg7[%c0_11, %c0_12] : memref<256x256xf32, #tpu.memory_space<vmem>>, vector<256x256xf32>
      tpu.vector_store %arg7[%c0_11, %c0_12], %12 {strides = array<i32>} : memref<256x256xf32, #tpu.memory_space<vmem>>, vector<256x256xf32>,
    } else {
    }
    %c0 = arith.constant 0 : index
    %c0_1 = arith.constant 0 : index
    %3 = vector.load %arg7[%c0, %c0_1] : memref<256x256xf32, #tpu.memory_space<vmem>>, vector<256x256xf32>
    %c0_2 = arith.constant 0 : index
    %c0_3 = arith.constant 0 : index
    %4 = vector.load %arg3[%c0_2, %c0_3] : memref<256x128xbf16, #tpu.memory_space<vmem>>, vector<256x128xbf16>
    %c0_4 = arith.constant 0 : index
    %c0_5 = arith.constant 0 : index
    %5 = vector.load %arg4[%c0_4, %c0_5] : memref<128x256xbf16, #tpu.memory_space<vmem>>, vector<128x256xbf16>
    %cst = arith.constant dense<0.000000e+00> : vector<256x256xf32>
    %6 = tpu.matmul %4, %5, %cst {dimension_numbers = #tpu.dot_dimension_numbers<[1], [0], [0], [1], [0, 0, 1, 1], [], []>} : vector<256x128xbf16>, vector<128x256xbf16>, vector<256x256xf32> -> vector<256x256xf32>
    %7 = arith.addf %3, %6 : vector<256x256xf32>
    %c0_6 = arith.constant 0 : index
    %c0_7 = arith.constant 0 : index
    %8 = vector.load %arg7[%c0_6, %c0_7] : memref<256x256xf32, #tpu.memory_space<vmem>>, vector<256x256xf32>
    tpu.vector_store %arg7[%c0_6, %c0_7], %7 {strides = array<i32>} : memref<256x256xf32, #tpu.memory_space<vmem>>, vector<256x256xf32>,
    %c0_i32_8 = arith.constant 0 : i32
    %9 = arith.cmpi eq, %arg2, %c0_i32_8 : i32
    %10 = arith.extui %9 : i1 to i32
    %c0_i32_9 = arith.constant 0 : i32
    %11 = arith.cmpi ne, %10, %c0_i32_9 : i32
    scf.if %11 {
      %c0_10 = arith.constant 0 : index
      %c0_11 = arith.constant 0 : index
      %12 = vector.load %arg7[%c0_10, %c0_11] : memref<256x256xf32, #tpu.memory_space<vmem>>, vector<256x256xf32>
      %c0_12 = arith.constant 0 : index
      %c0_13 = arith.constant 0 : index
      %13 = vector.load %arg5[%c0_12, %c0_13] : memref<1x256xf32, #tpu.memory_space<vmem>>, vector<1x256xf32>
      %14 = vector.broadcast %13 : vector<1x256xf32> to vector<256x256xf32>
      %15 = arith.addf %12, %14 : vector<256x256xf32>
      %cst_14 = arith.constant 5.000000e-01 : f32
      %16 = vector.broadcast %cst_14 : f32 to vector<256x256xf32>
      %17 = arith.mulf %16, %15 : vector<256x256xf32>
      %18 = math.tanh %17 : vector<256x256xf32>
      %cst_15 = arith.constant 1.000000e+00 : f32
      %19 = vector.broadcast %cst_15 : f32 to vector<256x256xf32>
      %20 = arith.addf %18, %19 : vector<256x256xf32>
      %cst_16 = arith.constant 5.000000e-01 : f32
      %21 = vector.broadcast %cst_16 : f32 to vector<256x256xf32>
      %22 = arith.mulf %21, %20 : vector<256x256xf32>
      %23 = arith.mulf %15, %22 : vector<256x256xf32>
      %c0_17 = arith.constant 0 : index
      %c0_18 = arith.constant 0 : index
      %24 = vector.load %arg6[%c0_17, %c0_18] : memref<256x256xf32, #tpu.memory_space<vmem>>, vector<256x256xf32>
      tpu.vector_store %arg6[%c0_17, %c0_18], %23 {strides = array<i32>} : memref<256x256xf32, #tpu.memory_space<vmem>>, vector<256x256xf32>,
    } else {
    }
    return
  }
  func.func @transform_0(%arg0: i32, %arg1: i32, %arg2: i32) -> (i32, i32) {
    %c0_i32 = arith.constant 0 : i32
    return %arg0, %arg2 : i32, i32
  }
  func.func @transform_1(%arg0: i32, %arg1: i32, %arg2: i32) -> (i32, i32) {
    %c0_i32 = arith.constant 0 : i32
    return %arg2, %arg1 : i32, i32
  }
  func.func @transform_2(%arg0: i32, %arg1: i32, %arg2: i32) -> (i32, i32) {
    %c0_i32 = arith.constant 0 : i32
    %c0_i32_0 = arith.constant 0 : i32
    return %c0_i32, %arg1 : i32, i32
  }
  func.func @transform_3(%arg0: i32, %arg1: i32, %arg2: i32) -> (i32, i32) {
    %c0_i32 = arith.constant 0 : i32
    return %arg0, %arg1 : i32, i32
  }
}

</mosaic_0001>

<llo_original>
// kernel: conv_forward.1
$region0: #{conv_forward.1}
  #allocation0 [shape = 'u32[]', space=smem, size = 0x4, offset = 0x4, fixed_abs, tag = 'smem constant byte address 0x4 - core index']
  #allocation1 [shape = 'u32[144,128]{1,0:T(1,128)}', space=vmem, size = 0x12000, scoped, tag = 'internal scratch']
  #allocation2 [shape = 'f32[256,256]{1,0:T(8,128)}', space=vmem, size = 0x40000, scoped, tag = 'scratch operand']
  %s0 = inlined_call_operand.vmem [shape: bf16[512,128], index: 0, kind: input, shape index: {}]
  %s1 = inlined_call_operand.vmem [shape: bf16[128,256], index: 1, kind: input, shape index: {}]
  %s2 = inlined_call_operand.vmem [shape: f32[1,256], index: 2, kind: input, shape index: {}]
  %s3 = inlined_call_operand.vmem [shape: f32[512,256], index: 3, kind: output, shape index: {}]
  %s4 = sld [smem:[#allocation0]]
  $region53: #{conv_forward.1} parent=0
    _
  %s6 = ssub.s32 1, %s4
  %s7 = scalar_select 0, %s6, %s4
  loop: start=0, step=1, limit=4
  $region2: #{conv_forward.1} parent=0 // loop_pre_header
    _
  $region3: #{conv_forward.1} parent=0 // loop_header
    %s9 = sphi 0, %s13
    %p10 = scmp.ge.s32.totalorder %s9, 4
    %s16 = sphi 0, %s35
    %s17 = sphi 0, %s31
    %s18 = sphi 0, %s27
    %s19 = sphi 0, %s16
    %s20 = sphi 0, %s17
    %s21 = sphi 0, %s18
    %s22 = sphi 0, %s19
    %s23 = sphi 0, %s20
    %s24 = sphi 0, %s21
    %s40 = sphi 0, %s42
    %s43 = sphi 0, %s40
    %s44 = sphi 0, %s43
    %s60 = sphi 0, %s44
    %s68 = sphi 0, %s70
    %s71 = sphi 0, %s68
    %s72 = sphi 0, %s71
    %s88 = sphi 0, %s72
    %s94 = sphi 0, %s96
    %s97 = sphi 0, %s94
    %s98 = sphi 0, %s97
    %s114 = sphi 0, %s98
    %s122 = sphi 0, %s124
    %s125 = sphi 0, %s122
    %s126 = sphi 0, %s125
    %s142 = sphi 0, %s126
  $region4: #{conv_forward.1} parent=0 // loop_header_branch
    %12 = sbr.rel (%p10) target = $region8
  $region5: #{conv_forward.1} parent=0 // loop_body
    %s14 = ssub.s32 %s9, 1
    %s15 = ssub.s32 %s9, 2
    %s25 = sadd.s32 1, %s18
    %p26 = scmp.ge.s32.totalorder %s25, 1
    %s27 = scalar_select %p26, 0, %s25
    %s28 = sadd.s32 1, %s17
    %s29 = scalar_select %p26, %s28, %s17
    %p30 = scmp.ge.s32.totalorder %s29, 1
    %s31 = scalar_select %p30, 0, %s29
    %s32 = sadd.s32 1, %s16
    %s33 = scalar_select %p30, %s32, %s16
    %p34 = scmp.ge.s32.totalorder %s33, 2
    %s35 = scalar_select %p34, 0, %s33
    %s36 = ssub.s32 %s16, %s35
    %s37 = ssub.s32 %s18, %s27
    %s38 = sor.u32 %s36, %s37
    %p39 = scmp.eq.s32.totalorder %s38, 0
    %s41 = sadd.s32 %s40, 1
    %s42 = scalar_select %p39, %s40, %s41
    %p45 = pneg %p39
    %p46 = scmp.eq.s32.totalorder %s9, 1
    %p47 = por %p45, %p46
    %p48 = scmp.ne.s32.totalorder %s40, %s43
    %p49 = scmp.eq.s32.totalorder %s9, 0
    %p50 = por %p48, %p49
    %p51 = scmp.ne.s32.totalorder %s40, %s43
    %p52 = scmp.eq.s32.totalorder %s14, 1
    %p53 = por %p51, %p52
    %p54 = scmp.ne.s32.totalorder %s43, %s44
    %p55 = scmp.eq.s32.totalorder %s14, 0
    %p56 = por %p54, %p55
    %p57 = scmp.ne.s32.totalorder %s43, %s44
    %p58 = scmp.eq.s32.totalorder %s15, 1
    %p59 = por %p57, %p58
    %p61 = scmp.ne.s32.totalorder %s44, %s60
    %p62 = scmp.eq.s32.totalorder %s15, 0
    %p63 = por %p61, %p62
    %s64 = ssub.s32 %s18, %s27
    %s65 = ssub.s32 %s17, %s31
    %s66 = sor.u32 %s64, %s65
    %p67 = scmp.eq.s32.totalorder %s66, 0
    %s69 = sadd.s32 %s68, 1
    %s70 = scalar_select %p67, %s68, %s69
    %p73 = pneg %p67
    %p74 = scmp.eq.s32.totalorder %s9, 1
    %p75 = por %p73, %p74
    %p76 = scmp.ne.s32.totalorder %s68, %s71
    %p77 = scmp.eq.s32.totalorder %s9, 0
    %p78 = por %p76, %p77
    %p79 = scmp.ne.s32.totalorder %s68, %s71
    %p80 = scmp.eq.s32.totalorder %s14, 1
    %p81 = por %p79, %p80
    %p82 = scmp.ne.s32.totalorder %s71, %s72
    %p83 = scmp.eq.s32.totalorder %s14, 0
    %p84 = por %p82, %p83
    %p85 = scmp.ne.s32.totalorder %s71, %s72
    %p86 = scmp.eq.s32.totalorder %s15, 1
    %p87 = por %p85, %p86
    %p89 = scmp.ne.s32.totalorder %s72, %s88
    %p90 = scmp.eq.s32.totalorder %s15, 0
    %p91 = por %p89, %p90
    %s92 = ssub.s32 %s17, %s31
    %p93 = scmp.eq.s32.totalorder %s92, 0
    %s95 = sadd.s32 %s94, 1
    %s96 = scalar_select %p93, %s94, %s95
    %p99 = pneg %p93
    %p100 = scmp.eq.s32.totalorder %s9, 1
    %p101 = por %p99, %p100
    %p102 = scmp.ne.s32.totalorder %s94, %s97
    %p103 = scmp.eq.s32.totalorder %s9, 0
    %p104 = por %p102, %p103
    %p105 = scmp.ne.s32.totalorder %s94, %s97
    %p106 = scmp.eq.s32.totalorder %s14, 1
    %p107 = por %p105, %p106
    %p108 = scmp.ne.s32.totalorder %s97, %s98
    %p109 = scmp.eq.s32.totalorder %s14, 0
    %p110 = por %p108, %p109
    %p111 = scmp.ne.s32.totalorder %s97, %s98
    %p112 = scmp.eq.s32.totalorder %s15, 1
    %p113 = por %p111, %p112
    %p115 = scmp.ne.s32.totalorder %s98, %s114
    %p116 = scmp.eq.s32.totalorder %s15, 0
    %p117 = por %p115, %p116
    %s118 = ssub.s32 %s16, %s35
    %s119 = ssub.s32 %s17, %s31
    %s120 = sor.u32 %s118, %s119
    %p121 = scmp.eq.s32.totalorder %s120, 0
    %s123 = sadd.s32 %s122, 1
    %s124 = scalar_select %p121, %s122, %s123
    %p127 = pneg %p121
    %p128 = scmp.eq.s32.totalorder %s9, 1
    %p129 = por %p127, %p128
    %p130 = scmp.ne.s32.totalorder %s122, %s125
    %p131 = scmp.eq.s32.totalorder %s9, 0
    %p132 = por %p130, %p131
    %p133 = scmp.ne.s32.totalorder %s122, %s125
    %p134 = scmp.eq.s32.totalorder %s14, 1
    %p135 = por %p133, %p134
    %p136 = scmp.ne.s32.totalorder %s125, %s126
    %p137 = scmp.eq.s32.totalorder %s14, 0
    %p138 = por %p136, %p137
    %p139 = scmp.ne.s32.totalorder %s125, %s126
    %p140 = scmp.eq.s32.totalorder %s15, 1
    %p141 = por %p139, %p140
    %p143 = scmp.ne.s32.totalorder %s126, %s142
    %p144 = scmp.eq.s32.totalorder %s15, 0
    %p145 = por %p143, %p144
    %p146 = scmp.le.s32.totalorder 1, %s9
    %p147 = scmp.lt.s32.totalorder %s9, 3
    %p148 = pnand %p146, %p147
    %p149 = pneg %p148
    // Predicated region
    $region9: #{conv_forward.1} parent=5 // pred_check
      _
    $region10: #{conv_forward.1} parent=5 // pred_check_branch
      %151 = sbr.rel (%p148) target = $region12
    $region11: #{conv_forward.1} parent=5 // pred_region
      %s152 = ssub.s32 %s9, 1
      // Predicated region
      $region13: #{conv_forward.1} parent=11 // pred_check
        %p153 = pneg %p84
      $region14: #{conv_forward.1} parent=11 // pred_check_branch
        %155 = sbr.rel (%p153) target = $region16
      $region15: #{conv_forward.1} parent=11 // pred_region
        %s156 = smul.u32 16, %s21
        %s157 = smul.u32 2, %s20
        %p158 = scmp.lt.s32.totalorder %s156, 15
        %s159 = scalar_select %p158, %s156, 15
        %p160 = scmp.lt.s32.totalorder %s157, 1
        %s161 = scalar_select %p160, %s157, 1
        %s162 = smul.addr %s159, 2
        %s163 = sadd.s32 %s161, %s162
        %s164 = smul.addr %s163, 4
        %s165 = scalar_lea.vmem %s1, %s164
        %s166 = smul.u32 16, %s21
        %s167 = smul.u32 2, %s20
      $region16: #{conv_forward.1} parent=11 // pred_fallthru
        _
      // Predicated region
      $region17: #{conv_forward.1} parent=11 // pred_check
        %p168 = pneg %p110
      $region18: #{conv_forward.1} parent=11 // pred_check_branch
        %170 = sbr.rel (%p168) target = $region20
      $region19: #{conv_forward.1} parent=11 // pred_region
        %s171 = smul.u32 2, %s20
        %p172 = scmp.lt.s32.totalorder %s171, 1
        %s173 = scalar_select %p172, %s171, 1
        %s174 = scalar_lea.vmem %s2, %s173
        %s175 = smul.u32 2, %s20
      $region20: #{conv_forward.1} parent=11 // pred_fallthru
        _
    $region12: #{conv_forward.1} parent=5 // pred_fallthru
      _
    %p176 = scmp.lt.s32.totalorder %s9, 2
    // Predicated region
    $region21: #{conv_forward.1} parent=5 // pred_check
      %p177 = pneg %p176
    $region22: #{conv_forward.1} parent=5 // pred_check_branch
      %179 = sbr.rel (%p177) target = $region24
    $region23: #{conv_forward.1} parent=5 // pred_region
      // Predicated region
      $region25: #{conv_forward.1} parent=23 // pred_check
        %p180 = pneg %p50
      $region26: #{conv_forward.1} parent=23 // pred_check_branch
        %182 = sbr.rel (%p180) target = $region28
      $region27: #{conv_forward.1} parent=23 // pred_region
        %s183 = smul.u32 32, %s16
        %p184 = scmp.lt.s32.totalorder %s183, 63
        %s185 = scalar_select %p184, %s183, 63
        %p186 = scmp.lt.s32.totalorder %s18, 0
        %s187 = scalar_select %p186, %s18, 0
        %s188 = sadd.s32 %s187, %s185
        %s189 = smul.addr %s188, 4
        %s190 = scalar_lea.vmem %s0, %s189
        %s191 = smul.u32 32, %s16
      $region28: #{conv_forward.1} parent=23 // pred_fallthru
        _
    $region24: #{conv_forward.1} parent=5 // pred_fallthru
      _
    %p192 = scmp.le.s32.totalorder 1, %s9
    %p193 = scmp.lt.s32.totalorder %s9, 3
    %p194 = pnand %p192, %p193
    %p195 = pneg %p194
    // Predicated region
    $region29: #{conv_forward.1} parent=5 // pred_check
      _
    $region30: #{conv_forward.1} parent=5 // pred_check_branch
      %197 = sbr.rel (%p194) target = $region32
    $region31: #{conv_forward.1} parent=5 // pred_region
      %s198 = ssub.s32 %s9, 1
      %s199 = smul.u32 32, %s19
      %p200 = scmp.lt.s32.totalorder %s199, 63
      %s201 = scalar_select %p200, %s199, 63
      %p202 = scmp.lt.s32.totalorder %s21, 0
      %s203 = scalar_select %p202, %s21, 0
      %s204 = sadd.s32 %s203, %s201
      %s205 = smul.addr %s204, 4
      %s206 = scalar_lea.vmem %s0, %s205
      %p207 = pneg %p56
      %p208 = pneg %p53
      %s209 = smul.u32 16, %s21
      %s210 = smul.u32 2, %s20
      %p211 = scmp.lt.s32.totalorder %s209, 15
      %s212 = scalar_select %p211, %s209, 15
      %p213 = scmp.lt.s32.totalorder %s210, 1
      %s214 = scalar_select %p213, %s210, 1
      %s215 = smul.addr %s212, 2
      %s216 = sadd.s32 %s214, %s215
      %s217 = smul.addr %s216, 4
      %s218 = scalar_lea.vmem %s1, %s217
      %p219 = pneg %p84
      %p220 = pneg %p81
      %s221 = smul.u32 2, %s20
      %p222 = scmp.lt.s32.totalorder %s221, 1
      %s223 = scalar_select %p222, %s221, 1
      %s224 = scalar_lea.vmem %s2, %s223
      %p225 = pneg %p110
      %p226 = pneg %p107
      %p227 = pneg %p138
      %p228 = pneg %p135
      %s229 = smul.u32 32, %s19
      %s230 = smul.u32 2, %s20
      %p231 = scmp.lt.s32.totalorder %s229, 63
      %s232 = scalar_select %p231, %s229, 63
      %p233 = scmp.lt.s32.totalorder %s230, 1
      %s234 = scalar_select %p233, %s230, 1
      %s235 = smul.addr %s232, 2
      %s236 = sadd.s32 %s234, %s235
      %s237 = smul.addr %s236, 8
      %s238 = scalar_lea.vmem %s3, %s237
      %s239 = smul.u32 32, %s19
      %p240 = scmp.lt.s32.totalorder %s239, 63
      %s241 = scalar_select %p240, %s239, 63
      %p242 = scmp.lt.s32.totalorder %s21, 0
      %s243 = scalar_select %p242, %s21, 0
      %s244 = sadd.s32 %s243, %s241
      %s245 = smul.addr %s244, 4
      %s246 = scalar_lea.vmem %s0, %s245
      %s247 = smul.u32 32, %s19
      %s248 = smul.u32 16, %s21
      %s249 = smul.u32 2, %s20
      %p250 = scmp.lt.s32.totalorder %s248, 15
      %s251 = scalar_select %p250, %s248, 15
      %p252 = scmp.lt.s32.totalorder %s249, 1
      %s253 = scalar_select %p252, %s249, 1
      %s254 = smul.addr %s251, 2
      %s255 = sadd.s32 %s253, %s254
      %s256 = smul.addr %s255, 4
      %s257 = scalar_lea.vmem %s1, %s256
      %s258 = smul.u32 16, %s21
      %s259 = smul.u32 2, %s20
      %s260 = smul.u32 2, %s20
      %p261 = scmp.lt.s32.totalorder %s260, 1
      %s262 = scalar_select %p261, %s260, 1
      %s263 = scalar_lea.vmem %s2, %s262
      %s264 = smul.u32 2, %s20
      %s265 = smul.u32 32, %s19
      %s266 = smul.u32 2, %s20
      %p267 = scmp.lt.s32.totalorder %s265, 63
      %s268 = scalar_select %p267, %s265, 63
      %p269 = scmp.lt.s32.totalorder %s266, 1
      %s270 = scalar_select %p269, %s266, 1
      %s271 = smul.addr %s268, 2
      %s272 = sadd.s32 %s270, %s271
      %s273 = smul.addr %s272, 8
      %s274 = scalar_lea.vmem %s3, %s273
      %s275 = smul.u32 32, %s19
      %s276 = smul.u32 2, %s20
      %p278 = scmp.eq.s32.totalorder %s21, 0
      // Predicated region
      $region33: #{conv_forward.1} parent=31 // pred_check
        %p279 = pneg %p278
      $region34: #{conv_forward.1} parent=31 // pred_check_branch
        %281 = sbr.rel (%p279) target = $region36
      $region35: #{conv_forward.1} parent=31 // pred_region
        %282 = vst [vmem:[#allocation2] sm:$0xff] 0.0
        %283 = vst [vmem:[#allocation2 + $0x8] sm:$0xff] 0.0
        %284 = vst [vmem:[#allocation2 + $0x10] sm:$0xff] 0.0
        %285 = vst [vmem:[#allocation2 + $0x18] sm:$0xff] 0.0
        %286 = vst [vmem:[#allocation2 + $0x20] sm:$0xff] 0.0
        %287 = vst [vmem:[#allocation2 + $0x28] sm:$0xff] 0.0
        %288 = vst [vmem:[#allocation2 + $0x30] sm:$0xff] 0.0
        %289 = vst [vmem:[#allocation2 + $0x38] sm:$0xff] 0.0
        %290 = vst [vmem:[#allocation2 + $0x40] sm:$0xff] 0.0
        %291 = vst [vmem:[#allocation2 + $0x48] sm:$0xff] 0.0
        %292 = vst [vmem:[#allocation2 + $0x50] sm:$0xff] 0.0
        %293 = vst [vmem:[#allocation2 + $0x58] sm:$0xff] 0.0
        %294 = vst [vmem:[#allocation2 + $0x60] sm:$0xff] 0.0
        %295 = vst [vmem:[#allocation2 + $0x68] sm:$0xff] 0.0
        %296 = vst [vmem:[#allocation2 + $0x70] sm:$0xff] 0.0
        %297 = vst [vmem:[#allocation2 + $0x78] sm:$0xff] 0.0
        %298 = vst [vmem:[#allocation2 + $0x80] sm:$0xff] 0.0
        %299 = vst [vmem:[#allocation2 + $0x88] sm:$0xff] 0.0
        %300 = vst [vmem:[#allocation2 + $0x90] sm:$0xff] 0.0
        %301 = vst [vmem:[#allocation2 + $0x98] sm:$0xff] 0.0
        %302 = vst [vmem:[#allocation2 + $0xa0] sm:$0xff] 0.0
        %303 = vst [vmem:[#allocation2 + $0xa8] sm:$0xff] 0.0
        %304 = vst [vmem:[#allocation2 + $0xb0] sm:$0xff] 0.0
        %305 = vst [vmem:[#allocation2 + $0xb8] sm:$0xff] 0.0
        %306 = vst [vmem:[#allocation2 + $0xc0] sm:$0xff] 0.0
        %307 = vst [vmem:[#allocation2 + $0xc8] sm:$0xff] 0.0
        %308 = vst [vmem:[#allocation2 + $0xd0] sm:$0xff] 0.0
        %309 = vst [vmem:[#allocation2 + $0xd8] sm:$0xff] 0.0
        %310 = vst [vmem:[#allocation2 + $0xe0] sm:$0xff] 0.0
        %311 = vst [vmem:[#allocation2 + $0xe8] sm:$0xff] 0.0
        %312 = vst [vmem:[#allocation2 + $0xf0] sm:$0xff] 0.0
        %313 = vst [vmem:[#allocation2 + $0xf8] sm:$0xff] 0.0
        %314 = vst [vmem:[#allocation2 + $0x100] sm:$0xff] 0.0
        %315 = vst [vmem:[#allocation2 + $0x108] sm:$0xff] 0.0
        %316 = vst [vmem:[#allocation2 + $0x110] sm:$0xff] 0.0
        %317 = vst [vmem:[#allocation2 + $0x118] sm:$0xff] 0.0
        %318 = vst [vmem:[#allocation2 + $0x120] sm:$0xff] 0.0
        %319 = vst [vmem:[#allocation2 + $0x128] sm:$0xff] 0.0
        %320 = vst [vmem:[#allocation2 + $0x130] sm:$0xff] 0.0
        %321 = vst [vmem:[#allocation2 + $0x138] sm:$0xff] 0.0
        %322 = vst [vmem:[#allocation2 + $0x140] sm:$0xff] 0.0
        %323 = vst [vmem:[#allocation2 + $0x148] sm:$0xff] 0.0
        %324 = vst [vmem:[#allocation2 + $0x150] sm:$0xff] 0.0
        %325 = vst [vmem:[#allocation2 + $0x158] sm:$0xff] 0.0
        %326 = vst [vmem:[#allocation2 + $0x160] sm:$0xff] 0.0
        %327 = vst [vmem:[#allocation2 + $0x168] sm:$0xff] 0.0
        %328 = vst [vmem:[#allocation2 + $0x170] sm:$0xff] 0.0
        %329 = vst [vmem:[#allocation2 + $0x178] sm:$0xff] 0.0
        %330 = vst [vmem:[#allocation2 + $0x180] sm:$0xff] 0.0
        %331 = vst [vmem:[#allocation2 + $0x188] sm:$0xff] 0.0
        %332 = vst [vmem:[#allocation2 + $0x190] sm:$0xff] 0.0
        %333 = vst [vmem:[#allocation2 + $0x198] sm:$0xff] 0.0
        %334 = vst [vmem:[#allocation2 + $0x1a0] sm:$0xff] 0.0
        %335 = vst [vmem:[#allocation2 + $0x1a8] sm:$0xff] 0.0
        %336 = vst [vmem:[#allocation2 + $0x1b0] sm:$0xff] 0.0
        %337 = vst [vmem:[#allocation2 + $0x1b8] sm:$0xff] 0.0
        %338 = vst [vmem:[#allocation2 + $0x1c0] sm:$0xff] 0.0
        %339 = vst [vmem:[#allocation2 + $0x1c8] sm:$0xff] 0.0
        %340 = vst [vmem:[#allocation2 + $0x1d0] sm:$0xff] 0.0
        %341 = vst [vmem:[#allocation2 + $0x1d8] sm:$0xff] 0.0
        %342 = vst [vmem:[#allocation2 + $0x1e0] sm:$0xff] 0.0
        %343 = vst [vmem:[#allocation2 + $0x1e8] sm:$0xff] 0.0
        %344 = vst [vmem:[#allocation2 + $0x1f0] sm:$0xff] 0.0
        %345 = vst [vmem:[#allocation2 + $0x1f8] sm:$0xff] 0.0
      $region36: #{conv_forward.1} parent=31 // pred_fallthru
        _
      %v346 = vld [vmem:[#allocation2] sm:$0xff]
      %v347 = vld [vmem:[#allocation2 + $0x8] sm:$0xff]
      %v348 = vld [vmem:[#allocation2 + $0x10] sm:$0xff]
      %v349 = vld [vmem:[#allocation2 + $0x18] sm:$0xff]
      %v350 = vld [vmem:[#allocation2 + $0x20] sm:$0xff]
      %v351 = vld [vmem:[#allocation2 + $0x28] sm:$0xff]
      %v352 = vld [vmem:[#allocation2 + $0x30] sm:$0xff]
      %v353 = vld [vmem:[#allocation2 + $0x38] sm:$0xff]
      %v354 = vld [vmem:[#allocation2 + $0x40] sm:$0xff]
      %v355 = vld [vmem:[#allocation2 + $0x48] sm:$0xff]
      %v356 = vld [vmem:[#allocation2 + $0x50] sm:$0xff]
      %v357 = vld [vmem:[#allocation2 + $0x58] sm:$0xff]
      %v358 = vld [vmem:[#allocation2 + $0x60] sm:$0xff]
      %v359 = vld [vmem:[#allocation2 + $0x68] sm:$0xff]
      %v360 = vld [vmem:[#allocation2 + $0x70] sm:$0xff]
      %v361 = vld [vmem:[#allocation2 + $0x78] sm:$0xff]
      %v362 = vld [vmem:[#allocation2 + $0x80] sm:$0xff]
      %v363 = vld [vmem:[#allocation2 + $0x88] sm:$0xff]
      %v364 = vld [vmem:[#allocation2 + $0x90] sm:$0xff]
      %v365 = vld [vmem:[#allocation2 + $0x98] sm:$0xff]
      %v366 = vld [vmem:[#allocation2 + $0xa0] sm:$0xff]
      %v367 = vld [vmem:[#allocation2 + $0xa8] sm:$0xff]
      %v368 = vld [vmem:[#allocation2 + $0xb0] sm:$0xff]
      %v369 = vld [vmem:[#allocation2 + $0xb8] sm:$0xff]
      %v370 = vld [vmem:[#allocation2 + $0xc0] sm:$0xff]
      %v371 = vld [vmem:[#allocation2 + $0xc8] sm:$0xff]
      %v372 = vld [vmem:[#allocation2 + $0xd0] sm:$0xff]
      %v373 = vld [vmem:[#allocation2 + $0xd8] sm:$0xff]
      %v374 = vld [vmem:[#allocation2 + $0xe0] sm:$0xff]
      %v375 = vld [vmem:[#allocation2 + $0xe8] sm:$0xff]
      %v376 = vld [vmem:[#allocation2 + $0xf0] sm:$0xff]
      %v377 = vld [vmem:[#allocation2 + $0xf8] sm:$0xff]
      %v378 = vld [vmem:[#allocation2 + $0x100] sm:$0xff]
      %v379 = vld [vmem:[#allocation2 + $0x108] sm:$0xff]
      %v380 = vld [vmem:[#allocation2 + $0x110] sm:$0xff]
      %v381 = vld [vmem:[#allocation2 + $0x118] sm:$0xff]
      %v382 = vld [vmem:[#allocation2 + $0x120] sm:$0xff]
      %v383 = vld [vmem:[#allocation2 + $0x128] sm:$0xff]
      %v384 = vld [vmem:[#allocation2 + $0x130] sm:$0xff]
      %v385 = vld [vmem:[#allocation2 + $0x138] sm:$0xff]
      %v386 = vld [vmem:[#allocation2 + $0x140] sm:$0xff]
      %v387 = vld [vmem:[#allocation2 + $0x148] sm:$0xff]
      %v388 = vld [vmem:[#allocation2 + $0x150] sm:$0xff]
      %v389 = vld [vmem:[#allocation2 + $0x158] sm:$0xff]
      %v390 = vld [vmem:[#allocation2 + $0x160] sm:$0xff]
      %v391 = vld [vmem:[#allocation2 + $0x168] sm:$0xff]
      %v392 = vld [vmem:[#allocation2 + $0x170] sm:$0xff]
      %v393 = vld [vmem:[#allocation2 + $0x178] sm:$0xff]
      %v394 = vld [vmem:[#allocation2 + $0x180] sm:$0xff]
      %v395 = vld [vmem:[#allocation2 + $0x188] sm:$0xff]
      %v396 = vld [vmem:[#allocation2 + $0x190] sm:$0xff]
      %v397 = vld [vmem:[#allocation2 + $0x198] sm:$0xff]
      %v398 = vld [vmem:[#allocation2 + $0x1a0] sm:$0xff]
      %v399 = vld [vmem:[#allocation2 + $0x1a8] sm:$0xff]
      %v400 = vld [vmem:[#allocation2 + $0x1b0] sm:$0xff]
      %v401 = vld [vmem:[#allocation2 + $0x1b8] sm:$0xff]
      %v402 = vld [vmem:[#allocation2 + $0x1c0] sm:$0xff]
      %v403 = vld [vmem:[#allocation2 + $0x1c8] sm:$0xff]
      %v404 = vld [vmem:[#allocation2 + $0x1d0] sm:$0xff]
      %v405 = vld [vmem:[#allocation2 + $0x1d8] sm:$0xff]
      %v406 = vld [vmem:[#allocation2 + $0x1e0] sm:$0xff]
      %v407 = vld [vmem:[#allocation2 + $0x1e8] sm:$0xff]
      %v408 = vld [vmem:[#allocation2 + $0x1f0] sm:$0xff]
      %v409 = vld [vmem:[#allocation2 + $0x1f8] sm:$0xff]
      %v410 = vld [vmem:[%s246] sm:$0xf]
      %v411 = vld [vmem:[%s246 + $0x4] sm:$0xf]
      %v412 = vld [vmem:[%s246 + $0x8] sm:$0xf]
      %v413 = vld [vmem:[%s246 + $0xc] sm:$0xf]
      %v414 = vld [vmem:[%s246 + $0x10] sm:$0xf]
      %v415 = vld [vmem:[%s246 + $0x14] sm:$0xf]
      %v416 = vld [vmem:[%s246 + $0x18] sm:$0xf]
      %v417 = vld [vmem:[%s246 + $0x1c] sm:$0xf]
      %v418 = vld [vmem:[%s246 + $0x20] sm:$0xf]
      %v419 = vld [vmem:[%s246 + $0x24] sm:$0xf]
      %v420 = vld [vmem:[%s246 + $0x28] sm:$0xf]
      %v421 = vld [vmem:[%s246 + $0x2c] sm:$0xf]
      %v422 = vld [vmem:[%s246 + $0x30] sm:$0xf]
      %v423 = vld [vmem:[%s246 + $0x34] sm:$0xf]
      %v424 = vld [vmem:[%s246 + $0x38] sm:$0xf]
      %v425 = vld [vmem:[%s246 + $0x3c] sm:$0xf]
      %v426 = vld [vmem:[%s246 + $0x40] sm:$0xf]
      %v427 = vld [vmem:[%s246 + $0x44] sm:$0xf]
      %v428 = vld [vmem:[%s246 + $0x48] sm:$0xf]
      %v429 = vld [vmem:[%s246 + $0x4c] sm:$0xf]
      %v430 = vld [vmem:[%s246 + $0x50] sm:$0xf]
      %v431 = vld [vmem:[%s246 + $0x54] sm:$0xf]
      %v432 = vld [vmem:[%s246 + $0x58] sm:$0xf]
      %v433 = vld [vmem:[%s246 + $0x5c] sm:$0xf]
      %v434 = vld [vmem:[%s246 + $0x60] sm:$0xf]
      %v435 = vld [vmem:[%s246 + $0x64] sm:$0xf]
      %v436 = vld [vmem:[%s246 + $0x68] sm:$0xf]
      %v437 = vld [vmem:[%s246 + $0x6c] sm:$0xf]
      %v438 = vld [vmem:[%s246 + $0x70] sm:$0xf]
      %v439 = vld [vmem:[%s246 + $0x74] sm:$0xf]
      %v440 = vld [vmem:[%s246 + $0x78] sm:$0xf]
      %v441 = vld [vmem:[%s246 + $0x7c] sm:$0xf]
      %v442 = vld [vmem:[%s257] sm:$0xff]
      %v443 = vld [vmem:[%s257 + $0x8] sm:$0xff]
      %v444 = vld [vmem:[%s257 + $0x10] sm:$0xff]
      %v445 = vld [vmem:[%s257 + $0x18] sm:$0xff]
      %v446 = vld [vmem:[%s257 + $0x20] sm:$0xff]
      %v447 = vld [vmem:[%s257 + $0x28] sm:$0xff]
      %v448 = vld [vmem:[%s257 + $0x30] sm:$0xff]
      %v449 = vld [vmem:[%s257 + $0x38] sm:$0xff]
      %v450 = vld [vmem:[%s257 + $0x40] sm:$0xff]
      %v451 = vld [vmem:[%s257 + $0x48] sm:$0xff]
      %v452 = vld [vmem:[%s257 + $0x50] sm:$0xff]
      %v453 = vld [vmem:[%s257 + $0x58] sm:$0xff]
      %v454 = vld [vmem:[%s257 + $0x60] sm:$0xff]
      %v455 = vld [vmem:[%s257 + $0x68] sm:$0xff]
      %v456 = vld [vmem:[%s257 + $0x70] sm:$0xff]
      %v457 = vld [vmem:[%s257 + $0x78] sm:$0xff]
      %v490 = vunpack.c.l.b16 %v410
      %v491 = vunpack.c.l.b16 %v411
      %v492 = vunpack.c.l.b16 %v412
      %v493 = vunpack.c.l.b16 %v413
      %v494 = vunpack.c.l.b16 %v414
      %v495 = vunpack.c.l.b16 %v415
      %v496 = vunpack.c.l.b16 %v416
      %v497 = vunpack.c.l.b16 %v417
      %v498 = vunpack.c.l.b16 %v418
      %v499 = vunpack.c.l.b16 %v419
      %v500 = vunpack.c.l.b16 %v420
      %v501 = vunpack.c.l.b16 %v421
      %v502 = vunpack.c.l.b16 %v422
      %v503 = vunpack.c.l.b16 %v423
      %v504 = vunpack.c.l.b16 %v424
      %v505 = vunpack.c.l.b16 %v425
      %v506 = vunpack.c.l.b16 %v426
      %v507 = vunpack.c.l.b16 %v427
      %v508 = vunpack.c.l.b16 %v428
      %v509 = vunpack.c.l.b16 %v429
      %v510 = vunpack.c.l.b16 %v430
      %v511 = vunpack.c.l.b16 %v431
      %v512 = vunpack.c.l.b16 %v432
      %v513 = vunpack.c.l.b16 %v433
      %v514 = vunpack.c.l.b16 %v434
      %v515 = vunpack.c.l.b16 %v435
      %v516 = vunpack.c.l.b16 %v436
      %v517 = vunpack.c.l.b16 %v437
      %v518 = vunpack.c.l.b16 %v438
      %v519 = vunpack.c.l.b16 %v439
      %v520 = vunpack.c.l.b16 %v440
      %v521 = vunpack.c.l.b16 %v441
      %v522 = vpack.c.b16 %v491, %v490
      %v523 = vpack.c.b16 %v493, %v492
      %v524 = vpack.c.b16 %v495, %v494
      %v525 = vpack.c.b16 %v497, %v496
      %v526 = vpack.c.b16 %v499, %v498
      %v527 = vpack.c.b16 %v501, %v500
      %v528 = vpack.c.b16 %v503, %v502
      %v529 = vpack.c.b16 %v505, %v504
      %v530 = vpack.c.b16 %v507, %v506
      %v531 = vpack.c.b16 %v509, %v508
      %v532 = vpack.c.b16 %v511, %v510
      %v533 = vpack.c.b16 %v513, %v512
      %v534 = vpack.c.b16 %v515, %v514
      %v535 = vpack.c.b16 %v517, %v516
      %v536 = vpack.c.b16 %v519, %v518
      %v537 = vpack.c.b16 %v521, %v520
      %v570 = vunpack.c.l.b16 %v442
      %v571 = vunpack.c.h.b16 %v442
      %v572 = vunpack.c.l.b16 %v443
      %v573 = vunpack.c.h.b16 %v443
      %v574 = vunpack.c.l.b16 %v444
      %v575 = vunpack.c.h.b16 %v444
      %v576 = vunpack.c.l.b16 %v445
      %v577 = vunpack.c.h.b16 %v445
      %v578 = vunpack.c.l.b16 %v446
      %v579 = vunpack.c.h.b16 %v446
      %v580 = vunpack.c.l.b16 %v447
      %v581 = vunpack.c.h.b16 %v447
      %v582 = vunpack.c.l.b16 %v448
      %v583 = vunpack.c.h.b16 %v448
      %v584 = vunpack.c.l.b16 %v449
      %v585 = vunpack.c.h.b16 %v449
      %v586 = vunpack.c.l.b16 %v450
      %v587 = vunpack.c.h.b16 %v450
      %v588 = vunpack.c.l.b16 %v451
      %v589 = vunpack.c.h.b16 %v451
      %v590 = vunpack.c.l.b16 %v452
      %v591 = vunpack.c.h.b16 %v452
      %v592 = vunpack.c.l.b16 %v453
      %v593 = vunpack.c.h.b16 %v453
      %v594 = vunpack.c.l.b16 %v454
      %v595 = vunpack.c.h.b16 %v454
      %v596 = vunpack.c.l.b16 %v455
      %v597 = vunpack.c.h.b16 %v455
      %v598 = vunpack.c.l.b16 %v456
      %v599 = vunpack.c.h.b16 %v456
      %v600 = vunpack.c.l.b16 %v457
      %v601 = vunpack.c.h.b16 %v457
      %v602 = vpack.c.b16 %v572, %v570
      %v603 = vpack.c.b16 %v573, %v571
      %v604 = vpack.c.b16 %v576, %v574
      %v605 = vpack.c.b16 %v577, %v575
      %v606 = vpack.c.b16 %v580, %v578
      %v607 = vpack.c.b16 %v581, %v579
      %v608 = vpack.c.b16 %v584, %v582
      %v609 = vpack.c.b16 %v585, %v583
      %v610 = vpack.c.b16 %v588, %v586
      %v611 = vpack.c.b16 %v589, %v587
      %v612 = vpack.c.b16 %v592, %v590
      %v613 = vpack.c.b16 %v593, %v591
      %v614 = vpack.c.b16 %v596, %v594
      %v615 = vpack.c.b16 %v597, %v595
      %v616 = vpack.c.b16 %v600, %v598
      %v617 = vpack.c.b16 %v601, %v599
      %634 = vmatprep.subr.bf16.mxu0 %v617
      %635 = vmatpush1.bf16.msra.mxu0 %v616
      %636 = vmatprep.subr.bf16.mxu0 %v615
      %637 = vmatpush1.bf16.msra.mxu0 %v614
      %638 = vmatprep.subr.bf16.mxu0 %v613
      %639 = vmatpush1.bf16.msra.mxu0 %v612
      %640 = vmatprep.subr.bf16.mxu0 %v611
      %641 = vmatpush1.bf16.msra.mxu0 %v610
      %642 = vmatprep.subr.bf16.mxu0 %v609
      %643 = vmatpush1.bf16.msra.mxu0 %v608
      %644 = vmatprep.subr.bf16.mxu0 %v607
      %645 = vmatpush1.bf16.msra.mxu0 %v606
      %646 = vmatprep.subr.bf16.mxu0 %v605
      %647 = vmatpush1.bf16.msra.mxu0 %v604
      %648 = vmatprep.subr.bf16.mxu0 %v603
      %649 = vmatpush1.bf16.msra.mxu0 %v602
      %650 = vmatprep.subr.bf16.mxu0 0
      %651 = vmatpush2.bf16.msra.mxu0 0
      %652 = vmatprep.subr.bf16.mxu0 0
      %653 = vmatpush2.bf16.msra.mxu0 0
      %654 = vmatprep.subr.bf16.mxu0 0
      %655 = vmatpush2.bf16.msra.mxu0 0
      %656 = vmatprep.subr.bf16.mxu0 0
      %657 = vmatpush2.bf16.msra.mxu0 0
      %658 = vmatprep.subr.bf16.mxu0 0
      %659 = vmatpush2.bf16.msra.mxu0 0
      %660 = vmatprep.subr.bf16.mxu0 0
      %661 = vmatpush2.bf16.msra.mxu0 0
      %662 = vmatprep.subr.bf16.mxu0 0
      %663 = vmatpush2.bf16.msra.mxu0 0
      %664 = vmatprep.subr.bf16.mxu0 0
      %665 = vmatpush2.bf16.msra.mxu0 0
      %666 = vmatprep.mubr.bf16.mxu0 0
      %667 = vmatmul.mubr.bf16.gmra.mxu0 %v522
      %v668 = vpop.f32.mrf.mxu0
      %v669 = vadd.f32 0.0, %v668
      %v670 = vpop.f32.mrf.mxu0
      %v671 = vadd.f32 0.0, %v670
      %v672 = vpop.f32.mrf.mxu0
      %v673 = vadd.f32 0.0, %v672
      %v674 = vpop.f32.mrf.mxu0
      %v675 = vadd.f32 0.0, %v674
      %676 = vmatprep.mubr.bf16.mxu0 0
      %677 = vmatmul.mubr.bf16.gmra.mxu0 %v523
      %v678 = vpop.f32.mrf.mxu0
      %v679 = vadd.f32 0.0, %v678
      %v680 = vpop.f32.mrf.mxu0
      %v681 = vadd.f32 0.0, %v680
      %v682 = vpop.f32.mrf.mxu0
      %v683 = vadd.f32 0.0, %v682
      %v684 = vpop.f32.mrf.mxu0
      %v685 = vadd.f32 0.0, %v684
      %686 = vmatprep.mubr.bf16.mxu0 0
      %687 = vmatmul.mubr.bf16.gmra.mxu0 %v524
      %v688 = vpop.f32.mrf.mxu0
      %v689 = vadd.f32 0.0, %v688
      %v690 = vpop.f32.mrf.mxu0
      %v691 = vadd.f32 0.0, %v690
      %v692 = vpop.f32.mrf.mxu0
      %v693 = vadd.f32 0.0, %v692
      %v694 = vpop.f32.mrf.mxu0
      %v695 = vadd.f32 0.0, %v694
      %696 = vmatprep.mubr.bf16.mxu0 0
      %697 = vmatmul.mubr.bf16.gmra.mxu0 %v525
      %v698 = vpop.f32.mrf.mxu0
      %v699 = vadd.f32 0.0, %v698
      %v700 = vpop.f32.mrf.mxu0
      %v701 = vadd.f32 0.0, %v700
      %v702 = vpop.f32.mrf.mxu0
      %v703 = vadd.f32 0.0, %v702
      %v704 = vpop.f32.mrf.mxu0
      %v705 = vadd.f32 0.0, %v704
      %706 = vmatprep.mubr.bf16.mxu0 0
      %707 = vmatmul.mubr.bf16.gmra.mxu0 %v526
      %v708 = vpop.f32.mrf.mxu0
      %v709 = vadd.f32 0.0, %v708
      %v710 = vpop.f32.mrf.mxu0
      %v711 = vadd.f32 0.0, %v710
      %v712 = vpop.f32.mrf.mxu0
      %v713 = vadd.f32 0.0, %v712
      %v714 = vpop.f32.mrf.mxu0
      %v715 = vadd.f32 0.0, %v714
      %716 = vmatprep.mubr.bf16.mxu0 0
      %717 = vmatmul.mubr.bf16.gmra.mxu0 %v527
      %v718 = vpop.f32.mrf.mxu0
      %v719 = vadd.f32 0.0, %v718
      %v720 = vpop.f32.mrf.mxu0
      %v721 = vadd.f32 0.0, %v720
      %v722 = vpop.f32.mrf.mxu0
      %v723 = vadd.f32 0.0, %v722
      %v724 = vpop.f32.mrf.mxu0
      %v725 = vadd.f32 0.0, %v724
      %726 = vmatprep.mubr.bf16.mxu0 0
      %727 = vmatmul.mubr.bf16.gmra.mxu0 %v528
      %v728 = vpop.f32.mrf.mxu0
      %v729 = vadd.f32 0.0, %v728
      %v730 = vpop.f32.mrf.mxu0
      %v731 = vadd.f32 0.0, %v730
      %v732 = vpop.f32.mrf.mxu0
      %v733 = vadd.f32 0.0, %v732
      %v734 = vpop.f32.mrf.mxu0
      %v735 = vadd.f32 0.0, %v734
      %736 = vmatprep.mubr.bf16.mxu0 0
      %737 = vmatmul.mubr.bf16.gmra.mxu0 %v529
      %v738 = vpop.f32.mrf.mxu0
      %v739 = vadd.f32 0.0, %v738
      %v740 = vpop.f32.mrf.mxu0
      %v741 = vadd.f32 0.0, %v740
      %v742 = vpop.f32.mrf.mxu0
      %v743 = vadd.f32 0.0, %v742
      %v744 = vpop.f32.mrf.mxu0
      %v745 = vadd.f32 0.0, %v744
      %746 = vmatprep.mubr.bf16.mxu0 0
      %747 = vmatmul.mubr.bf16.gmra.mxu0 %v530
      %v748 = vpop.f32.mrf.mxu0
      %v749 = vadd.f32 0.0, %v748
      %v750 = vpop.f32.mrf.mxu0
      %v751 = vadd.f32 0.0, %v750
      %v752 = vpop.f32.mrf.mxu0
      %v753 = vadd.f32 0.0, %v752
      %v754 = vpop.f32.mrf.mxu0
      %v755 = vadd.f32 0.0, %v754
      %756 = vmatprep.mubr.bf16.mxu0 0
      %757 = vmatmul.mubr.bf16.gmra.mxu0 %v531
      %v758 = vpop.f32.mrf.mxu0
      %v759 = vadd.f32 0.0, %v758
      %v760 = vpop.f32.mrf.mxu0
      %v761 = vadd.f32 0.0, %v760
      %v762 = vpop.f32.mrf.mxu0
      %v763 = vadd.f32 0.0, %v762
      %v764 = vpop.f32.mrf.mxu0
      %v765 = vadd.f32 0.0, %v764
      %766 = vmatprep.mubr.bf16.mxu0 0
      %767 = vmatmul.mubr.bf16.gmra.mxu0 %v532
      %v768 = vpop.f32.mrf.mxu0
      %v769 = vadd.f32 0.0, %v768
      %v770 = vpop.f32.mrf.mxu0
      %v771 = vadd.f32 0.0, %v770
      %v772 = vpop.f32.mrf.mxu0
      %v773 = vadd.f32 0.0, %v772
      %v774 = vpop.f32.mrf.mxu0
      %v775 = vadd.f32 0.0, %v774
      %776 = vmatprep.mubr.bf16.mxu0 0
      %777 = vmatmul.mubr.bf16.gmra.mxu0 %v533
      %v778 = vpop.f32.mrf.mxu0
      %v779 = vadd.f32 0.0, %v778
      %v780 = vpop.f32.mrf.mxu0
      %v781 = vadd.f32 0.0, %v780
      %v782 = vpop.f32.mrf.mxu0
      %v783 = vadd.f32 0.0, %v782
      %v784 = vpop.f32.mrf.mxu0
      %v785 = vadd.f32 0.0, %v784
      %786 = vmatprep.mubr.bf16.mxu0 0
      %787 = vmatmul.mubr.bf16.gmra.mxu0 %v534
      %v788 = vpop.f32.mrf.mxu0
      %v789 = vadd.f32 0.0, %v788
      %v790 = vpop.f32.mrf.mxu0
      %v791 = vadd.f32 0.0, %v790
      %v792 = vpop.f32.mrf.mxu0
      %v793 = vadd.f32 0.0, %v792
      %v794 = vpop.f32.mrf.mxu0
      %v795 = vadd.f32 0.0, %v794
      %796 = vmatprep.mubr.bf16.mxu0 0
      %797 = vmatmul.mubr.bf16.gmra.mxu0 %v535
      %v798 = vpop.f32.mrf.mxu0
      %v799 = vadd.f32 0.0, %v798
      %v800 = vpop.f32.mrf.mxu0
      %v801 = vadd.f32 0.0, %v800
      %v802 = vpop.f32.mrf.mxu0
      %v803 = vadd.f32 0.0, %v802
      %v804 = vpop.f32.mrf.mxu0
      %v805 = vadd.f32 0.0, %v804
      %806 = vmatprep.mubr.bf16.mxu0 0
      %807 = vmatmul.mubr.bf16.gmra.mxu0 %v536
      %v808 = vpop.f32.mrf.mxu0
      %v809 = vadd.f32 0.0, %v808
      %v810 = vpop.f32.mrf.mxu0
      %v811 = vadd.f32 0.0, %v810
      %v812 = vpop.f32.mrf.mxu0
      %v813 = vadd.f32 0.0, %v812
      %v814 = vpop.f32.mrf.mxu0
      %v815 = vadd.f32 0.0, %v814
      %816 = vmatprep.mubr.bf16.mxu0 0
      %817 = vmatmul.mubr.bf16.gmra.mxu0 %v537
      %v818 = vpop.f32.mrf.mxu0
      %v819 = vadd.f32 0.0, %v818
      %v820 = vpop.f32.mrf.mxu0
      %v821 = vadd.f32 0.0, %v820
      %v822 = vpop.f32.mrf.mxu0
      %v823 = vadd.f32 0.0, %v822
      %v824 = vpop.f32.mrf.mxu0
      %v825 = vadd.f32 0.0, %v824
      %826 = vdwg.mxu0
      %v827 = vadd.f32 %v346, %v669
      %v828 = vadd.f32 %v347, %v671
      %v829 = vadd.f32 %v348, %v673
      %v830 = vadd.f32 %v349, %v675
      %v831 = vadd.f32 %v350, %v679
      %v832 = vadd.f32 %v351, %v681
      %v833 = vadd.f32 %v352, %v683
      %v834 = vadd.f32 %v353, %v685
      %v835 = vadd.f32 %v354, %v689
      %v836 = vadd.f32 %v355, %v691
      %v837 = vadd.f32 %v356, %v693
      %v838 = vadd.f32 %v357, %v695
      %v839 = vadd.f32 %v358, %v699
      %v840 = vadd.f32 %v359, %v701
      %v841 = vadd.f32 %v360, %v703
      %v842 = vadd.f32 %v361, %v705
      %v843 = vadd.f32 %v362, %v709
      %v844 = vadd.f32 %v363, %v711
      %v845 = vadd.f32 %v364, %v713
      %v846 = vadd.f32 %v365, %v715
      %v847 = vadd.f32 %v366, %v719
      %v848 = vadd.f32 %v367, %v721
      %v849 = vadd.f32 %v368, %v723
      %v850 = vadd.f32 %v369, %v725
      %v851 = vadd.f32 %v370, %v729
      %v852 = vadd.f32 %v371, %v731
      %v853 = vadd.f32 %v372, %v733
      %v854 = vadd.f32 %v373, %v735
      %v855 = vadd.f32 %v374, %v739
      %v856 = vadd.f32 %v375, %v741
      %v857 = vadd.f32 %v376, %v743
      %v858 = vadd.f32 %v377, %v745
      %v859 = vadd.f32 %v378, %v749
      %v860 = vadd.f32 %v379, %v751
      %v861 = vadd.f32 %v380, %v753
      %v862 = vadd.f32 %v381, %v755
      %v863 = vadd.f32 %v382, %v759
      %v864 = vadd.f32 %v383, %v761
      %v865 = vadd.f32 %v384, %v763
      %v866 = vadd.f32 %v385, %v765
      %v867 = vadd.f32 %v386, %v769
      %v868 = vadd.f32 %v387, %v771
      %v869 = vadd.f32 %v388, %v773
      %v870 = vadd.f32 %v389, %v775
      %v871 = vadd.f32 %v390, %v779
      %v872 = vadd.f32 %v391, %v781
      %v873 = vadd.f32 %v392, %v783
      %v874 = vadd.f32 %v393, %v785
      %v875 = vadd.f32 %v394, %v789
      %v876 = vadd.f32 %v395, %v791
      %v877 = vadd.f32 %v396, %v793
      %v878 = vadd.f32 %v397, %v795
      %v879 = vadd.f32 %v398, %v799
      %v880 = vadd.f32 %v399, %v801
      %v881 = vadd.f32 %v400, %v803
      %v882 = vadd.f32 %v401, %v805
      %v883 = vadd.f32 %v402, %v809
      %v884 = vadd.f32 %v403, %v811
      %v885 = vadd.f32 %v404, %v813
      %v886 = vadd.f32 %v405, %v815
      %v887 = vadd.f32 %v406, %v819
      %v888 = vadd.f32 %v407, %v821
      %v889 = vadd.f32 %v408, %v823
      %v890 = vadd.f32 %v409, %v825
      %891 = vst [vmem:[#allocation2] sm:$0xff] %v827
      %892 = vst [vmem:[#allocation2 + $0x8] sm:$0xff] %v828
      %893 = vst [vmem:[#allocation2 + $0x10] sm:$0xff] %v829
      %894 = vst [vmem:[#allocation2 + $0x18] sm:$0xff] %v830
      %895 = vst [vmem:[#allocation2 + $0x20] sm:$0xff] %v831
      %896 = vst [vmem:[#allocation2 + $0x28] sm:$0xff] %v832
      %897 = vst [vmem:[#allocation2 + $0x30] sm:$0xff] %v833
      %898 = vst [vmem:[#allocation2 + $0x38] sm:$0xff] %v834
      %899 = vst [vmem:[#allocation2 + $0x40] sm:$0xff] %v835
      %900 = vst [vmem:[#allocation2 + $0x48] sm:$0xff] %v836
      %901 = vst [vmem:[#allocation2 + $0x50] sm:$0xff] %v837
      %902 = vst [vmem:[#allocation2 + $0x58] sm:$0xff] %v838
      %903 = vst [vmem:[#allocation2 + $0x60] sm:$0xff] %v839
      %904 = vst [vmem:[#allocation2 + $0x68] sm:$0xff] %v840
      %905 = vst [vmem:[#allocation2 + $0x70] sm:$0xff] %v841
      %906 = vst [vmem:[#allocation2 + $0x78] sm:$0xff] %v842
      %907 = vst [vmem:[#allocation2 + $0x80] sm:$0xff] %v843
      %908 = vst [vmem:[#allocation2 + $0x88] sm:$0xff] %v844
      %909 = vst [vmem:[#allocation2 + $0x90] sm:$0xff] %v845
      %910 = vst [vmem:[#allocation2 + $0x98] sm:$0xff] %v846
      %911 = vst [vmem:[#allocation2 + $0xa0] sm:$0xff] %v847
      %912 = vst [vmem:[#allocation2 + $0xa8] sm:$0xff] %v848
      %913 = vst [vmem:[#allocation2 + $0xb0] sm:$0xff] %v849
      %914 = vst [vmem:[#allocation2 + $0xb8] sm:$0xff] %v850
      %915 = vst [vmem:[#allocation2 + $0xc0] sm:$0xff] %v851
      %916 = vst [vmem:[#allocation2 + $0xc8] sm:$0xff] %v852
      %917 = vst [vmem:[#allocation2 + $0xd0] sm:$0xff] %v853
      %918 = vst [vmem:[#allocation2 + $0xd8] sm:$0xff] %v854
      %919 = vst [vmem:[#allocation2 + $0xe0] sm:$0xff] %v855
      %920 = vst [vmem:[#allocation2 + $0xe8] sm:$0xff] %v856
      %921 = vst [vmem:[#allocation2 + $0xf0] sm:$0xff] %v857
      %922 = vst [vmem:[#allocation2 + $0xf8] sm:$0xff] %v858
      %923 = vst [vmem:[#allocation2 + $0x100] sm:$0xff] %v859
      %924 = vst [vmem:[#allocation2 + $0x108] sm:$0xff] %v860
      %925 = vst [vmem:[#allocation2 + $0x110] sm:$0xff] %v861
      %926 = vst [vmem:[#allocation2 + $0x118] sm:$0xff] %v862
      %927 = vst [vmem:[#allocation2 + $0x120] sm:$0xff] %v863
      %928 = vst [vmem:[#allocation2 + $0x128] sm:$0xff] %v864
      %929 = vst [vmem:[#allocation2 + $0x130] sm:$0xff] %v865
      %930 = vst [vmem:[#allocation2 + $0x138] sm:$0xff] %v866
      %931 = vst [vmem:[#allocation2 + $0x140] sm:$0xff] %v867
      %932 = vst [vmem:[#allocation2 + $0x148] sm:$0xff] %v868
      %933 = vst [vmem:[#allocation2 + $0x150] sm:$0xff] %v869
      %934 = vst [vmem:[#allocation2 + $0x158] sm:$0xff] %v870
      %935 = vst [vmem:[#allocation2 + $0x160] sm:$0xff] %v871
      %936 = vst [vmem:[#allocation2 + $0x168] sm:$0xff] %v872
      %937 = vst [vmem:[#allocation2 + $0x170] sm:$0xff] %v873
      %938 = vst [vmem:[#allocation2 + $0x178] sm:$0xff] %v874
      %939 = vst [vmem:[#allocation2 + $0x180] sm:$0xff] %v875
      %940 = vst [vmem:[#allocation2 + $0x188] sm:$0xff] %v876
      %941 = vst [vmem:[#allocation2 + $0x190] sm:$0xff] %v877
      %942 = vst [vmem:[#allocation2 + $0x198] sm:$0xff] %v878
      %943 = vst [vmem:[#allocation2 + $0x1a0] sm:$0xff] %v879
      %944 = vst [vmem:[#allocation2 + $0x1a8] sm:$0xff] %v880
      %945 = vst [vmem:[#allocation2 + $0x1b0] sm:$0xff] %v881
      %946 = vst [vmem:[#allocation2 + $0x1b8] sm:$0xff] %v882
      %947 = vst [vmem:[#allocation2 + $0x1c0] sm:$0xff] %v883
      %948 = vst [vmem:[#allocation2 + $0x1c8] sm:$0xff] %v884
      %949 = vst [vmem:[#allocation2 + $0x1d0] sm:$0xff] %v885
      %950 = vst [vmem:[#allocation2 + $0x1d8] sm:$0xff] %v886
      %951 = vst [vmem:[#allocation2 + $0x1e0] sm:$0xff] %v887
      %952 = vst [vmem:[#allocation2 + $0x1e8] sm:$0xff] %v888
      %953 = vst [vmem:[#allocation2 + $0x1f0] sm:$0xff] %v889
      %954 = vst [vmem:[#allocation2 + $0x1f8] sm:$0xff] %v890
      // Predicated region
      $region37: #{conv_forward.1} parent=31 // pred_check
        %p955 = pneg %p278
      $region38: #{conv_forward.1} parent=31 // pred_check_branch
        %957 = sbr.rel (%p955) target = $region40
      $region39: #{conv_forward.1} parent=31 // pred_region
        %v958 = vld [vmem:[#allocation2] sm:$0xff]
        %v959 = vld [vmem:[#allocation2 + $0x8] sm:$0xff]
        %v960 = vld [vmem:[#allocation2 + $0x10] sm:$0xff]
        %v961 = vld [vmem:[#allocation2 + $0x18] sm:$0xff]
        %v962 = vld [vmem:[#allocation2 + $0x20] sm:$0xff]
        %v963 = vld [vmem:[#allocation2 + $0x28] sm:$0xff]
        %v964 = vld [vmem:[#allocation2 + $0x30] sm:$0xff]
        %v965 = vld [vmem:[#allocation2 + $0x38] sm:$0xff]
        %v966 = vld [vmem:[#allocation2 + $0x40] sm:$0xff]
        %v967 = vld [vmem:[#allocation2 + $0x48] sm:$0xff]
        %v968 = vld [vmem:[#allocation2 + $0x50] sm:$0xff]
        %v969 = vld [vmem:[#allocation2 + $0x58] sm:$0xff]
        %v970 = vld [vmem:[#allocation2 + $0x60] sm:$0xff]
        %v971 = vld [vmem:[#allocation2 + $0x68] sm:$0xff]
        %v972 = vld [vmem:[#allocation2 + $0x70] sm:$0xff]
        %v973 = vld [vmem:[#allocation2 + $0x78] sm:$0xff]
        %v974 = vld [vmem:[#allocation2 + $0x80] sm:$0xff]
        %v975 = vld [vmem:[#allocation2 + $0x88] sm:$0xff]
        %v976 = vld [vmem:[#allocation2 + $0x90] sm:$0xff]
        %v977 = vld [vmem:[#allocation2 + $0x98] sm:$0xff]
        %v978 = vld [vmem:[#allocation2 + $0xa0] sm:$0xff]
        %v979 = vld [vmem:[#allocation2 + $0xa8] sm:$0xff]
        %v980 = vld [vmem:[#allocation2 + $0xb0] sm:$0xff]
        %v981 = vld [vmem:[#allocation2 + $0xb8] sm:$0xff]
        %v982 = vld [vmem:[#allocation2 + $0xc0] sm:$0xff]
        %v983 = vld [vmem:[#allocation2 + $0xc8] sm:$0xff]
        %v984 = vld [vmem:[#allocation2 + $0xd0] sm:$0xff]
        %v985 = vld [vmem:[#allocation2 + $0xd8] sm:$0xff]
        %v986 = vld [vmem:[#allocation2 + $0xe0] sm:$0xff]
        %v987 = vld [vmem:[#allocation2 + $0xe8] sm:$0xff]
        %v988 = vld [vmem:[#allocation2 + $0xf0] sm:$0xff]
        %v989 = vld [vmem:[#allocation2 + $0xf8] sm:$0xff]
        %v990 = vld [vmem:[#allocation2 + $0x100] sm:$0xff]
        %v991 = vld [vmem:[#allocation2 + $0x108] sm:$0xff]
        %v992 = vld [vmem:[#allocation2 + $0x110] sm:$0xff]
        %v993 = vld [vmem:[#allocation2 + $0x118] sm:$0xff]
        %v994 = vld [vmem:[#allocation2 + $0x120] sm:$0xff]
        %v995 = vld [vmem:[#allocation2 + $0x128] sm:$0xff]
        %v996 = vld [vmem:[#allocation2 + $0x130] sm:$0xff]
        %v997 = vld [vmem:[#allocation2 + $0x138] sm:$0xff]
        %v998 = vld [vmem:[#allocation2 + $0x140] sm:$0xff]
        %v999 = vld [vmem:[#allocation2 + $0x148] sm:$0xff]
        %v1000 = vld [vmem:[#allocation2 + $0x150] sm:$0xff]
        %v1001 = vld [vmem:[#allocation2 + $0x158] sm:$0xff]
        %v1002 = vld [vmem:[#allocation2 + $0x160] sm:$0xff]
        %v1003 = vld [vmem:[#allocation2 + $0x168] sm:$0xff]
        %v1004 = vld [vmem:[#allocation2 + $0x170] sm:$0xff]
        %v1005 = vld [vmem:[#allocation2 + $0x178] sm:$0xff]
        %v1006 = vld [vmem:[#allocation2 + $0x180] sm:$0xff]
        %v1007 = vld [vmem:[#allocation2 + $0x188] sm:$0xff]
        %v1008 = vld [vmem:[#allocation2 + $0x190] sm:$0xff]
        %v1009 = vld [vmem:[#allocation2 + $0x198] sm:$0xff]
        %v1010 = vld [vmem:[#allocation2 + $0x1a0] sm:$0xff]
        %v1011 = vld [vmem:[#allocation2 + $0x1a8] sm:$0xff]
        %v1012 = vld [vmem:[#allocation2 + $0x1b0] sm:$0xff]
        %v1013 = vld [vmem:[#allocation2 + $0x1b8] sm:$0xff]
        %v1014 = vld [vmem:[#allocation2 + $0x1c0] sm:$0xff]
        %v1015 = vld [vmem:[#allocation2 + $0x1c8] sm:$0xff]
        %v1016 = vld [vmem:[#allocation2 + $0x1d0] sm:$0xff]
        %v1017 = vld [vmem:[#allocation2 + $0x1d8] sm:$0xff]
        %v1018 = vld [vmem:[#allocation2 + $0x1e0] sm:$0xff]
        %v1019 = vld [vmem:[#allocation2 + $0x1e8] sm:$0xff]
        %v1020 = vld [vmem:[#allocation2 + $0x1f0] sm:$0xff]
        %v1021 = vld [vmem:[#allocation2 + $0x1f8] sm:$0xff]
        %v1022 = vld [vmem:[%s263] sm:$0x3]
        %v1024 = vlaneseq
        %v1025 = vshrl.u32 %v1024, 7
        %v1026 = vsub.s32 0, %v1025
        %v1027 = vrot.slane %v1022, %v1026
        %v1028 = vlaneseq
        %v1029 = vshrl.u32 %v1028, 7
        %v1030 = vsub.s32 1, %v1029
        %v1031 = vrot.slane %v1022, %v1030
        %v1034 = vadd.f32 %v958, %v1027
        %v1035 = vadd.f32 %v959, %v1031
        %v1036 = vadd.f32 %v960, %v1027
        %v1037 = vadd.f32 %v961, %v1031
        %v1038 = vadd.f32 %v962, %v1027
        %v1039 = vadd.f32 %v963, %v1031
        %v1040 = vadd.f32 %v964, %v1027
        %v1041 = vadd.f32 %v965, %v1031
        %v1042 = vadd.f32 %v966, %v1027
        %v1043 = vadd.f32 %v967, %v1031
        %v1044 = vadd.f32 %v968, %v1027
        %v1045 = vadd.f32 %v969, %v1031
        %v1046 = vadd.f32 %v970, %v1027
        %v1047 = vadd.f32 %v971, %v1031
        %v1048 = vadd.f32 %v972, %v1027
        %v1049 = vadd.f32 %v973, %v1031
        %v1050 = vadd.f32 %v974, %v1027
        %v1051 = vadd.f32 %v975, %v1031
        %v1052 = vadd.f32 %v976, %v1027
        %v1053 = vadd.f32 %v977, %v1031
        %v1054 = vadd.f32 %v978, %v1027
        %v1055 = vadd.f32 %v979, %v1031
        %v1056 = vadd.f32 %v980, %v1027
        %v1057 = vadd.f32 %v981, %v1031
        %v1058 = vadd.f32 %v982, %v1027
        %v1059 = vadd.f32 %v983, %v1031
        %v1060 = vadd.f32 %v984, %v1027
        %v1061 = vadd.f32 %v985, %v1031
        %v1062 = vadd.f32 %v986, %v1027
        %v1063 = vadd.f32 %v987, %v1031
        %v1064 = vadd.f32 %v988, %v1027
        %v1065 = vadd.f32 %v989, %v1031
        %v1066 = vadd.f32 %v990, %v1027
        %v1067 = vadd.f32 %v991, %v1031
        %v1068 = vadd.f32 %v992, %v1027
        %v1069 = vadd.f32 %v993, %v1031
        %v1070 = vadd.f32 %v994, %v1027
        %v1071 = vadd.f32 %v995, %v1031
        %v1072 = vadd.f32 %v996, %v1027
        %v1073 = vadd.f32 %v997, %v1031
        %v1074 = vadd.f32 %v998, %v1027
        %v1075 = vadd.f32 %v999, %v1031
        %v1076 = vadd.f32 %v1000, %v1027
        %v1077 = vadd.f32 %v1001, %v1031
        %v1078 = vadd.f32 %v1002, %v1027
        %v1079 = vadd.f32 %v1003, %v1031
        %v1080 = vadd.f32 %v1004, %v1027
        %v1081 = vadd.f32 %v1005, %v1031
        %v1082 = vadd.f32 %v1006, %v1027
        %v1083 = vadd.f32 %v1007, %v1031
        %v1084 = vadd.f32 %v1008, %v1027
        %v1085 = vadd.f32 %v1009, %v1031
        %v1086 = vadd.f32 %v1010, %v1027
        %v1087 = vadd.f32 %v1011, %v1031
        %v1088 = vadd.f32 %v1012, %v1027
        %v1089 = vadd.f32 %v1013, %v1031
        %v1090 = vadd.f32 %v1014, %v1027
        %v1091 = vadd.f32 %v1015, %v1031
        %v1092 = vadd.f32 %v1016, %v1027
        %v1093 = vadd.f32 %v1017, %v1031
        %v1094 = vadd.f32 %v1018, %v1027
        %v1095 = vadd.f32 %v1019, %v1031
        %v1096 = vadd.f32 %v1020, %v1027
        %v1097 = vadd.f32 %v1021, %v1031
        %v1098 = vmul.f32 %v1034, 0.5
        %v1099 = vmul.f32 %v1035, 0.5
        %v1100 = vmul.f32 %v1036, 0.5
        %v1101 = vmul.f32 %v1037, 0.5
        %v1102 = vmul.f32 %v1038, 0.5
        %v1103 = vmul.f32 %v1039, 0.5
        %v1104 = vmul.f32 %v1040, 0.5
        %v1105 = vmul.f32 %v1041, 0.5
        %v1106 = vmul.f32 %v1042, 0.5
        %v1107 = vmul.f32 %v1043, 0.5
        %v1108 = vmul.f32 %v1044, 0.5
        %v1109 = vmul.f32 %v1045, 0.5
        %v1110 = vmul.f32 %v1046, 0.5
        %v1111 = vmul.f32 %v1047, 0.5
        %v1112 = vmul.f32 %v1048, 0.5
        %v1113 = vmul.f32 %v1049, 0.5
        %v1114 = vmul.f32 %v1050, 0.5
        %v1115 = vmul.f32 %v1051, 0.5
        %v1116 = vmul.f32 %v1052, 0.5
        %v1117 = vmul.f32 %v1053, 0.5
        %v1118 = vmul.f32 %v1054, 0.5
        %v1119 = vmul.f32 %v1055, 0.5
        %v1120 = vmul.f32 %v1056, 0.5
        %v1121 = vmul.f32 %v1057, 0.5
        %v1122 = vmul.f32 %v1058, 0.5
        %v1123 = vmul.f32 %v1059, 0.5
        %v1124 = vmul.f32 %v1060, 0.5
        %v1125 = vmul.f32 %v1061, 0.5
        %v1126 = vmul.f32 %v1062, 0.5
        %v1127 = vmul.f32 %v1063, 0.5
        %v1128 = vmul.f32 %v1064, 0.5
        %v1129 = vmul.f32 %v1065, 0.5
        %v1130 = vmul.f32 %v1066, 0.5
        %v1131 = vmul.f32 %v1067, 0.5
        %v1132 = vmul.f32 %v1068, 0.5
        %v1133 = vmul.f32 %v1069, 0.5
        %v1134 = vmul.f32 %v1070, 0.5
        %v1135 = vmul.f32 %v1071, 0.5
        %v1136 = vmul.f32 %v1072, 0.5
        %v1137 = vmul.f32 %v1073, 0.5
        %v1138 = vmul.f32 %v1074, 0.5
        %v1139 = vmul.f32 %v1075, 0.5
        %v1140 = vmul.f32 %v1076, 0.5
        %v1141 = vmul.f32 %v1077, 0.5
        %v1142 = vmul.f32 %v1078, 0.5
        %v1143 = vmul.f32 %v1079, 0.5
        %v1144 = vmul.f32 %v1080, 0.5
        %v1145 = vmul.f32 %v1081, 0.5
        %v1146 = vmul.f32 %v1082, 0.5
        %v1147 = vmul.f32 %v1083, 0.5
        %v1148 = vmul.f32 %v1084, 0.5
        %v1149 = vmul.f32 %v1085, 0.5
        %v1150 = vmul.f32 %v1086, 0.5
        %v1151 = vmul.f32 %v1087, 0.5
        %v1152 = vmul.f32 %v1088, 0.5
        %v1153 = vmul.f32 %v1089, 0.5
        %v1154 = vmul.f32 %v1090, 0.5
        %v1155 = vmul.f32 %v1091, 0.5
        %v1156 = vmul.f32 %v1092, 0.5
        %v1157 = vmul.f32 %v1093, 0.5
        %v1158 = vmul.f32 %v1094, 0.5
        %v1159 = vmul.f32 %v1095, 0.5
        %v1160 = vmul.f32 %v1096, 0.5
        %v1161 = vmul.f32 %v1097, 0.5
        %v1162 = vtanh.pop %v1098
        %v1163 = vtanh.pop %v1099
        %v1164 = vtanh.pop %v1100
        %v1165 = vtanh.pop %v1101
        %v1166 = vtanh.pop %v1102
        %v1167 = vtanh.pop %v1103
        %v1168 = vtanh.pop %v1104
        %v1169 = vtanh.pop %v1105
        %v1170 = vtanh.pop %v1106
        %v1171 = vtanh.pop %v1107
        %v1172 = vtanh.pop %v1108
        %v1173 = vtanh.pop %v1109
        %v1174 = vtanh.pop %v1110
        %v1175 = vtanh.pop %v1111
        %v1176 = vtanh.pop %v1112
        %v1177 = vtanh.pop %v1113
        %v1178 = vtanh.pop %v1114
        %v1179 = vtanh.pop %v1115
        %v1180 = vtanh.pop %v1116
        %v1181 = vtanh.pop %v1117
        %v1182 = vtanh.pop %v1118
        %v1183 = vtanh.pop %v1119
        %v1184 = vtanh.pop %v1120
        %v1185 = vtanh.pop %v1121
        %v1186 = vtanh.pop %v1122
        %v1187 = vtanh.pop %v1123
        %v1188 = vtanh.pop %v1124
        %v1189 = vtanh.pop %v1125
        %v1190 = vtanh.pop %v1126
        %v1191 = vtanh.pop %v1127
        %v1192 = vtanh.pop %v1128
        %v1193 = vtanh.pop %v1129
        %v1194 = vtanh.pop %v1130
        %v1195 = vtanh.pop %v1131
        %v1196 = vtanh.pop %v1132
        %v1197 = vtanh.pop %v1133
        %v1198 = vtanh.pop %v1134
        %v1199 = vtanh.pop %v1135
        %v1200 = vtanh.pop %v1136
        %v1201 = vtanh.pop %v1137
        %v1202 = vtanh.pop %v1138
        %v1203 = vtanh.pop %v1139
        %v1204 = vtanh.pop %v1140
        %v1205 = vtanh.pop %v1141
        %v1206 = vtanh.pop %v1142
        %v1207 = vtanh.pop %v1143
        %v1208 = vtanh.pop %v1144
        %v1209 = vtanh.pop %v1145
        %v1210 = vtanh.pop %v1146
        %v1211 = vtanh.pop %v1147
        %v1212 = vtanh.pop %v1148
        %v1213 = vtanh.pop %v1149
        %v1214 = vtanh.pop %v1150
        %v1215 = vtanh.pop %v1151
        %v1216 = vtanh.pop %v1152
        %v1217 = vtanh.pop %v1153
        %v1218 = vtanh.pop %v1154
        %v1219 = vtanh.pop %v1155
        %v1220 = vtanh.pop %v1156
        %v1221 = vtanh.pop %v1157
        %v1222 = vtanh.pop %v1158
        %v1223 = vtanh.pop %v1159
        %v1224 = vtanh.pop %v1160
        %v1225 = vtanh.pop %v1161
        %v1226 = vadd.f32 %v1162, 1.0
        %v1227 = vadd.f32 %v1163, 1.0
        %v1228 = vadd.f32 %v1164, 1.0
        %v1229 = vadd.f32 %v1165, 1.0
        %v1230 = vadd.f32 %v1166, 1.0
        %v1231 = vadd.f32 %v1167, 1.0
        %v1232 = vadd.f32 %v1168, 1.0
        %v1233 = vadd.f32 %v1169, 1.0
        %v1234 = vadd.f32 %v1170, 1.0
        %v1235 = vadd.f32 %v1171, 1.0
        %v1236 = vadd.f32 %v1172, 1.0
        %v1237 = vadd.f32 %v1173, 1.0
        %v1238 = vadd.f32 %v1174, 1.0
        %v1239 = vadd.f32 %v1175, 1.0
        %v1240 = vadd.f32 %v1176, 1.0
        %v1241 = vadd.f32 %v1177, 1.0
        %v1242 = vadd.f32 %v1178, 1.0
        %v1243 = vadd.f32 %v1179, 1.0
        %v1244 = vadd.f32 %v1180, 1.0
        %v1245 = vadd.f32 %v1181, 1.0
        %v1246 = vadd.f32 %v1182, 1.0
        %v1247 = vadd.f32 %v1183, 1.0
        %v1248 = vadd.f32 %v1184, 1.0
        %v1249 = vadd.f32 %v1185, 1.0
        %v1250 = vadd.f32 %v1186, 1.0
        %v1251 = vadd.f32 %v1187, 1.0
        %v1252 = vadd.f32 %v1188, 1.0
        %v1253 = vadd.f32 %v1189, 1.0
        %v1254 = vadd.f32 %v1190, 1.0
        %v1255 = vadd.f32 %v1191, 1.0
        %v1256 = vadd.f32 %v1192, 1.0
        %v1257 = vadd.f32 %v1193, 1.0
        %v1258 = vadd.f32 %v1194, 1.0
        %v1259 = vadd.f32 %v1195, 1.0
        %v1260 = vadd.f32 %v1196, 1.0
        %v1261 = vadd.f32 %v1197, 1.0
        %v1262 = vadd.f32 %v1198, 1.0
        %v1263 = vadd.f32 %v1199, 1.0
        %v1264 = vadd.f32 %v1200, 1.0
        %v1265 = vadd.f32 %v1201, 1.0
        %v1266 = vadd.f32 %v1202, 1.0
        %v1267 = vadd.f32 %v1203, 1.0
        %v1268 = vadd.f32 %v1204, 1.0
        %v1269 = vadd.f32 %v1205, 1.0
        %v1270 = vadd.f32 %v1206, 1.0
        %v1271 = vadd.f32 %v1207, 1.0
        %v1272 = vadd.f32 %v1208, 1.0
        %v1273 = vadd.f32 %v1209, 1.0
        %v1274 = vadd.f32 %v1210, 1.0
        %v1275 = vadd.f32 %v1211, 1.0
        %v1276 = vadd.f32 %v1212, 1.0
        %v1277 = vadd.f32 %v1213, 1.0
        %v1278 = vadd.f32 %v1214, 1.0
        %v1279 = vadd.f32 %v1215, 1.0
        %v1280 = vadd.f32 %v1216, 1.0
        %v1281 = vadd.f32 %v1217, 1.0
        %v1282 = vadd.f32 %v1218, 1.0
        %v1283 = vadd.f32 %v1219, 1.0
        %v1284 = vadd.f32 %v1220, 1.0
        %v1285 = vadd.f32 %v1221, 1.0
        %v1286 = vadd.f32 %v1222, 1.0
        %v1287 = vadd.f32 %v1223, 1.0
        %v1288 = vadd.f32 %v1224, 1.0
        %v1289 = vadd.f32 %v1225, 1.0
        %v1290 = vmul.f32 %v1226, 0.5
        %v1291 = vmul.f32 %v1227, 0.5
        %v1292 = vmul.f32 %v1228, 0.5
        %v1293 = vmul.f32 %v1229, 0.5
        %v1294 = vmul.f32 %v1230, 0.5
        %v1295 = vmul.f32 %v1231, 0.5
        %v1296 = vmul.f32 %v1232, 0.5
        %v1297 = vmul.f32 %v1233, 0.5
        %v1298 = vmul.f32 %v1234, 0.5
        %v1299 = vmul.f32 %v1235, 0.5
        %v1300 = vmul.f32 %v1236, 0.5
        %v1301 = vmul.f32 %v1237, 0.5
        %v1302 = vmul.f32 %v1238, 0.5
        %v1303 = vmul.f32 %v1239, 0.5
        %v1304 = vmul.f32 %v1240, 0.5
        %v1305 = vmul.f32 %v1241, 0.5
        %v1306 = vmul.f32 %v1242, 0.5
        %v1307 = vmul.f32 %v1243, 0.5
        %v1308 = vmul.f32 %v1244, 0.5
        %v1309 = vmul.f32 %v1245, 0.5
        %v1310 = vmul.f32 %v1246, 0.5
        %v1311 = vmul.f32 %v1247, 0.5
        %v1312 = vmul.f32 %v1248, 0.5
        %v1313 = vmul.f32 %v1249, 0.5
        %v1314 = vmul.f32 %v1250, 0.5
        %v1315 = vmul.f32 %v1251, 0.5
        %v1316 = vmul.f32 %v1252, 0.5
        %v1317 = vmul.f32 %v1253, 0.5
        %v1318 = vmul.f32 %v1254, 0.5
        %v1319 = vmul.f32 %v1255, 0.5
        %v1320 = vmul.f32 %v1256, 0.5
        %v1321 = vmul.f32 %v1257, 0.5
        %v1322 = vmul.f32 %v1258, 0.5
        %v1323 = vmul.f32 %v1259, 0.5
        %v1324 = vmul.f32 %v1260, 0.5
        %v1325 = vmul.f32 %v1261, 0.5
        %v1326 = vmul.f32 %v1262, 0.5
        %v1327 = vmul.f32 %v1263, 0.5
        %v1328 = vmul.f32 %v1264, 0.5
        %v1329 = vmul.f32 %v1265, 0.5
        %v1330 = vmul.f32 %v1266, 0.5
        %v1331 = vmul.f32 %v1267, 0.5
        %v1332 = vmul.f32 %v1268, 0.5
        %v1333 = vmul.f32 %v1269, 0.5
        %v1334 = vmul.f32 %v1270, 0.5
        %v1335 = vmul.f32 %v1271, 0.5
        %v1336 = vmul.f32 %v1272, 0.5
        %v1337 = vmul.f32 %v1273, 0.5
        %v1338 = vmul.f32 %v1274, 0.5
        %v1339 = vmul.f32 %v1275, 0.5
        %v1340 = vmul.f32 %v1276, 0.5
        %v1341 = vmul.f32 %v1277, 0.5
        %v1342 = vmul.f32 %v1278, 0.5
        %v1343 = vmul.f32 %v1279, 0.5
        %v1344 = vmul.f32 %v1280, 0.5
        %v1345 = vmul.f32 %v1281, 0.5
        %v1346 = vmul.f32 %v1282, 0.5
        %v1347 = vmul.f32 %v1283, 0.5
        %v1348 = vmul.f32 %v1284, 0.5
        %v1349 = vmul.f32 %v1285, 0.5
        %v1350 = vmul.f32 %v1286, 0.5
        %v1351 = vmul.f32 %v1287, 0.5
        %v1352 = vmul.f32 %v1288, 0.5
        %v1353 = vmul.f32 %v1289, 0.5
        %v1354 = vmul.f32 %v1034, %v1290
        %v1355 = vmul.f32 %v1035, %v1291
        %v1356 = vmul.f32 %v1036, %v1292
        %v1357 = vmul.f32 %v1037, %v1293
        %v1358 = vmul.f32 %v1038, %v1294
        %v1359 = vmul.f32 %v1039, %v1295
        %v1360 = vmul.f32 %v1040, %v1296
        %v1361 = vmul.f32 %v1041, %v1297
        %v1362 = vmul.f32 %v1042, %v1298
        %v1363 = vmul.f32 %v1043, %v1299
        %v1364 = vmul.f32 %v1044, %v1300
        %v1365 = vmul.f32 %v1045, %v1301
        %v1366 = vmul.f32 %v1046, %v1302
        %v1367 = vmul.f32 %v1047, %v1303
        %v1368 = vmul.f32 %v1048, %v1304
        %v1369 = vmul.f32 %v1049, %v1305
        %v1370 = vmul.f32 %v1050, %v1306
        %v1371 = vmul.f32 %v1051, %v1307
        %v1372 = vmul.f32 %v1052, %v1308
        %v1373 = vmul.f32 %v1053, %v1309
        %v1374 = vmul.f32 %v1054, %v1310
        %v1375 = vmul.f32 %v1055, %v1311
        %v1376 = vmul.f32 %v1056, %v1312
        %v1377 = vmul.f32 %v1057, %v1313
        %v1378 = vmul.f32 %v1058, %v1314
        %v1379 = vmul.f32 %v1059, %v1315
        %v1380 = vmul.f32 %v1060, %v1316
        %v1381 = vmul.f32 %v1061, %v1317
        %v1382 = vmul.f32 %v1062, %v1318
        %v1383 = vmul.f32 %v1063, %v1319
        %v1384 = vmul.f32 %v1064, %v1320
        %v1385 = vmul.f32 %v1065, %v1321
        %v1386 = vmul.f32 %v1066, %v1322
        %v1387 = vmul.f32 %v1067, %v1323
        %v1388 = vmul.f32 %v1068, %v1324
        %v1389 = vmul.f32 %v1069, %v1325
        %v1390 = vmul.f32 %v1070, %v1326
        %v1391 = vmul.f32 %v1071, %v1327
        %v1392 = vmul.f32 %v1072, %v1328
        %v1393 = vmul.f32 %v1073, %v1329
        %v1394 = vmul.f32 %v1074, %v1330
        %v1395 = vmul.f32 %v1075, %v1331
        %v1396 = vmul.f32 %v1076, %v1332
        %v1397 = vmul.f32 %v1077, %v1333
        %v1398 = vmul.f32 %v1078, %v1334
        %v1399 = vmul.f32 %v1079, %v1335
        %v1400 = vmul.f32 %v1080, %v1336
        %v1401 = vmul.f32 %v1081, %v1337
        %v1402 = vmul.f32 %v1082, %v1338
        %v1403 = vmul.f32 %v1083, %v1339
        %v1404 = vmul.f32 %v1084, %v1340
        %v1405 = vmul.f32 %v1085, %v1341
        %v1406 = vmul.f32 %v1086, %v1342
        %v1407 = vmul.f32 %v1087, %v1343
        %v1408 = vmul.f32 %v1088, %v1344
        %v1409 = vmul.f32 %v1089, %v1345
        %v1410 = vmul.f32 %v1090, %v1346
        %v1411 = vmul.f32 %v1091, %v1347
        %v1412 = vmul.f32 %v1092, %v1348
        %v1413 = vmul.f32 %v1093, %v1349
        %v1414 = vmul.f32 %v1094, %v1350
        %v1415 = vmul.f32 %v1095, %v1351
        %v1416 = vmul.f32 %v1096, %v1352
        %v1417 = vmul.f32 %v1097, %v1353
        %1418 = vst [vmem:[%s274] sm:$0xff] %v1354
        %1419 = vst [vmem:[%s274 + $0x8] sm:$0xff] %v1355
        %1420 = vst [vmem:[%s274 + $0x10] sm:$0xff] %v1356
        %1421 = vst [vmem:[%s274 + $0x18] sm:$0xff] %v1357
        %1422 = vst [vmem:[%s274 + $0x20] sm:$0xff] %v1358
        %1423 = vst [vmem:[%s274 + $0x28] sm:$0xff] %v1359
        %1424 = vst [vmem:[%s274 + $0x30] sm:$0xff] %v1360
        %1425 = vst [vmem:[%s274 + $0x38] sm:$0xff] %v1361
        %1426 = vst [vmem:[%s274 + $0x40] sm:$0xff] %v1362
        %1427 = vst [vmem:[%s274 + $0x48] sm:$0xff] %v1363
        %1428 = vst [vmem:[%s274 + $0x50] sm:$0xff] %v1364
        %1429 = vst [vmem:[%s274 + $0x58] sm:$0xff] %v1365
        %1430 = vst [vmem:[%s274 + $0x60] sm:$0xff] %v1366
        %1431 = vst [vmem:[%s274 + $0x68] sm:$0xff] %v1367
        %1432 = vst [vmem:[%s274 + $0x70] sm:$0xff] %v1368
        %1433 = vst [vmem:[%s274 + $0x78] sm:$0xff] %v1369
        %1434 = vst [vmem:[%s274 + $0x80] sm:$0xff] %v1370
        %1435 = vst [vmem:[%s274 + $0x88] sm:$0xff] %v1371
        %1436 = vst [vmem:[%s274 + $0x90] sm:$0xff] %v1372
        %1437 = vst [vmem:[%s274 + $0x98] sm:$0xff] %v1373
        %1438 = vst [vmem:[%s274 + $0xa0] sm:$0xff] %v1374
        %1439 = vst [vmem:[%s274 + $0xa8] sm:$0xff] %v1375
        %1440 = vst [vmem:[%s274 + $0xb0] sm:$0xff] %v1376
        %1441 = vst [vmem:[%s274 + $0xb8] sm:$0xff] %v1377
        %1442 = vst [vmem:[%s274 + $0xc0] sm:$0xff] %v1378
        %1443 = vst [vmem:[%s274 + $0xc8] sm:$0xff] %v1379
        %1444 = vst [vmem:[%s274 + $0xd0] sm:$0xff] %v1380
        %1445 = vst [vmem:[%s274 + $0xd8] sm:$0xff] %v1381
        %1446 = vst [vmem:[%s274 + $0xe0] sm:$0xff] %v1382
        %1447 = vst [vmem:[%s274 + $0xe8] sm:$0xff] %v1383
        %1448 = vst [vmem:[%s274 + $0xf0] sm:$0xff] %v1384
        %1449 = vst [vmem:[%s274 + $0xf8] sm:$0xff] %v1385
        %1450 = vst [vmem:[%s274 + $0x100] sm:$0xff] %v1386
        %1451 = vst [vmem:[%s274 + $0x108] sm:$0xff] %v1387
        %1452 = vst [vmem:[%s274 + $0x110] sm:$0xff] %v1388
        %1453 = vst [vmem:[%s274 + $0x118] sm:$0xff] %v1389
        %1454 = vst [vmem:[%s274 + $0x120] sm:$0xff] %v1390
        %1455 = vst [vmem:[%s274 + $0x128] sm:$0xff] %v1391
        %1456 = vst [vmem:[%s274 + $0x130] sm:$0xff] %v1392
        %1457 = vst [vmem:[%s274 + $0x138] sm:$0xff] %v1393
        %1458 = vst [vmem:[%s274 + $0x140] sm:$0xff] %v1394
        %1459 = vst [vmem:[%s274 + $0x148] sm:$0xff] %v1395
        %1460 = vst [vmem:[%s274 + $0x150] sm:$0xff] %v1396
        %1461 = vst [vmem:[%s274 + $0x158] sm:$0xff] %v1397
        %1462 = vst [vmem:[%s274 + $0x160] sm:$0xff] %v1398
        %1463 = vst [vmem:[%s274 + $0x168] sm:$0xff] %v1399
        %1464 = vst [vmem:[%s274 + $0x170] sm:$0xff] %v1400
        %1465 = vst [vmem:[%s274 + $0x178] sm:$0xff] %v1401
        %1466 = vst [vmem:[%s274 + $0x180] sm:$0xff] %v1402
        %1467 = vst [vmem:[%s274 + $0x188] sm:$0xff] %v1403
        %1468 = vst [vmem:[%s274 + $0x190] sm:$0xff] %v1404
        %1469 = vst [vmem:[%s274 + $0x198] sm:$0xff] %v1405
        %1470 = vst [vmem:[%s274 + $0x1a0] sm:$0xff] %v1406
        %1471 = vst [vmem:[%s274 + $0x1a8] sm:$0xff] %v1407
        %1472 = vst [vmem:[%s274 + $0x1b0] sm:$0xff] %v1408
        %1473 = vst [vmem:[%s274 + $0x1b8] sm:$0xff] %v1409
        %1474 = vst [vmem:[%s274 + $0x1c0] sm:$0xff] %v1410
        %1475 = vst [vmem:[%s274 + $0x1c8] sm:$0xff] %v1411
        %1476 = vst [vmem:[%s274 + $0x1d0] sm:$0xff] %v1412
        %1477 = vst [vmem:[%s274 + $0x1d8] sm:$0xff] %v1413
        %1478 = vst [vmem:[%s274 + $0x1e0] sm:$0xff] %v1414
        %1479 = vst [vmem:[%s274 + $0x1e8] sm:$0xff] %v1415
        %1480 = vst [vmem:[%s274 + $0x1f0] sm:$0xff] %v1416
        %1481 = vst [vmem:[%s274 + $0x1f8] sm:$0xff] %v1417
      $region40: #{conv_forward.1} parent=31 // pred_fallthru
        _
      %s1482 = smul.u32 32, %s19
      %s1483 = smul.u32 2, %s20
      %p1484 = scmp.lt.s32.totalorder %s1482, 63
      %s1485 = scalar_select %p1484, %s1482, 63
      %p1486 = scmp.lt.s32.totalorder %s1483, 1
      %s1487 = scalar_select %p1486, %s1483, 1
      %s1488 = smul.addr %s1485, 2
      %s1489 = sadd.s32 %s1487, %s1488
      %s1490 = smul.addr %s1489, 8
      %s1491 = scalar_lea.vmem %s3, %s1490
      // Predicated region
      $region41: #{conv_forward.1} parent=31 // pred_check
        %p1492 = pneg %p135
      $region42: #{conv_forward.1} parent=31 // pred_check_branch
        %1494 = sbr.rel (%p1492) target = $region44
      $region43: #{conv_forward.1} parent=31 // pred_region
        %s1495 = smul.u32 32, %s19
        %s1496 = smul.u32 2, %s20
      $region44: #{conv_forward.1} parent=31 // pred_fallthru
        _
    $region32: #{conv_forward.1} parent=5 // pred_fallthru
      _
    %p1497 = scmp.le.s32.totalorder 2, %s9
    // Predicated region
    $region45: #{conv_forward.1} parent=5 // pred_check
      %p1498 = pneg %p1497
    $region46: #{conv_forward.1} parent=5 // pred_check_branch
      %1500 = sbr.rel (%p1498) target = $region48
    $region47: #{conv_forward.1} parent=5 // pred_region
      %s1501 = ssub.s32 %s9, 2
      // Predicated region
      $region49: #{conv_forward.1} parent=47 // pred_check
        %p1502 = pneg %p141
      $region50: #{conv_forward.1} parent=47 // pred_check_branch
        %1504 = sbr.rel (%p1502) target = $region52
      $region51: #{conv_forward.1} parent=47 // pred_region
        %s1505 = smul.u32 32, %s22
        %s1506 = smul.u32 2, %s23
        %p1507 = scmp.lt.s32.totalorder %s1505, 63
        %s1508 = scalar_select %p1507, %s1505, 63
        %p1509 = scmp.lt.s32.totalorder %s1506, 1
        %s1510 = scalar_select %p1509, %s1506, 1
        %s1511 = smul.addr %s1508, 2
        %s1512 = sadd.s32 %s1510, %s1511
        %s1513 = smul.addr %s1512, 8
        %s1514 = scalar_lea.vmem %s3, %s1513
      $region52: #{conv_forward.1} parent=47 // pred_fallthru
        _
    $region48: #{conv_forward.1} parent=5 // pred_fallthru
      _
  $region6: #{conv_forward.1} parent=0 // loop_footer
    %s13 = sadd.s32 1, %s9
  $region7: #{conv_forward.1} parent=0 // loop_footer_branch
    %8 = sbr.rel target = $region3
  $region8: #{conv_forward.1} parent=0 // loop_exit
    _

</llo_original>
